<compile_context>
chip_gen: v7x
topology: tpu7x:2x2x1
jax: 0.10.0
libtpu: 0.0.40
codegen_flags: <defaults>
</compile_context>

<pallas_src>
import functools

import jax
import jax.numpy as jnp
from jax.experimental import pallas as pl
from jax.experimental.pallas import tpu as pltpu


# ----------------------------------------------------------------------------
# Pallas kernel 1: bf16 GEMM + K-axis accumulator + fused (shift [+res] [+relu])
# ----------------------------------------------------------------------------
def _gemm_epilogue_kernel(*refs, relu: bool, has_res: bool):
    if has_res:
        a_ref, b_ref, shift_ref, res_ref, o_ref, acc_ref = refs
    else:
        a_ref, b_ref, shift_ref, o_ref, acc_ref = refs

    @pl.when(pl.program_id(2) == 0)
    def _():
        acc_ref[...] = jnp.zeros_like(acc_ref)

    acc_ref[...] += jnp.dot(a_ref[...], b_ref[...],
                            preferred_element_type=jnp.float32)

    @pl.when(pl.program_id(2) == pl.num_programs(2) - 1)
    def _():
        out = acc_ref[...] + shift_ref[...]
        if has_res:
            out = out + res_ref[...]
        if relu:
            out = jnp.maximum(out, 0.0)
        o_ref[...] = out


def _round_up(x, m):
    return -(-x // m) * m


def pallas_gemm_fused(a, b, shift, *, relu, residual=None,
                      tm=256, tn=256, tk=2048):
    """out = act(a @ b + shift [+ residual]).

    a:(M,K) b:(K,N) shift:(N,) residual:(M,N) or None.  Matmul in bf16 on the MXU,
    accumulation/epilogue in f32.  Tile sizes adapt to the real dims; only the
    minimal MXU alignment (M->8, K/N->128) is padded via a single jnp.pad each.
    NOTE: 256-wide tiles suit v6e/v7x; on v5e 128-wide is already MXU-saturating
    (at the demo shapes every GEMM is a single block either way).
    """
    M, K = a.shape
    N = b.shape[1]

    bm = min(_round_up(M, 8), tm)
    bn = min(_round_up(N, 128), tn)
    bk = min(_round_up(K, 128), tk)
    Mp, Np, Kp = _round_up(M, bm), _round_up(N, bn), _round_up(K, bk)

    a_bf = a.astype(jnp.bfloat16)
    b_bf = b.astype(jnp.bfloat16)
    if (Mp, Kp) != (M, K):
        a_bf = jnp.pad(a_bf, ((0, Mp - M), (0, Kp - K)))
    if (Kp, Np) != (K, N):
        b_bf = jnp.pad(b_bf, ((0, Kp - K), (0, Np - N)))
    shift_p = shift.astype(jnp.float32).reshape(1, N)
    if Np != N:
        shift_p = jnp.pad(shift_p, ((0, 0), (0, Np - N)))

    has_res = residual is not None
    args = [a_bf, b_bf, shift_p]
    in_specs = [
        pl.BlockSpec((bm, bk), lambda i, j, k: (i, k)),
        pl.BlockSpec((bk, bn), lambda i, j, k: (k, j)),
        pl.BlockSpec((1, bn), lambda i, j, k: (0, j)),
    ]
    if has_res:
        res_p = residual.astype(jnp.float32)
        if (Mp, Np) != (M, N):
            res_p = jnp.pad(res_p, ((0, Mp - M), (0, Np - N)))
        args.append(res_p)
        in_specs.append(pl.BlockSpec((bm, bn), lambda i, j, k: (i, j)))

    out = pl.pallas_call(
        functools.partial(_gemm_epilogue_kernel, relu=relu, has_res=has_res),
        out_shape=jax.ShapeDtypeStruct((Mp, Np), jnp.float32),
        grid_spec=pltpu.PrefetchScalarGridSpec(
            num_scalar_prefetch=0,
            grid=(Mp // bm, Np // bn, Kp // bk),
            in_specs=in_specs,
            out_specs=pl.BlockSpec((bm, bn), lambda i, j, k: (i, j)),
            scratch_shapes=[pltpu.VMEM((bm, bn), jnp.float32)],
        ),
        compiler_params=pltpu.CompilerParams(
            dimension_semantics=("parallel", "parallel", "arbitrary")),
    )(*args)
    if (Mp, Np) != (M, N):
        out = out[:M, :N]
    return out


# ----------------------------------------------------------------------------
# Pallas kernel 2: perturbed Fenchel-Young loss (flattened over tasks*batch)
# ----------------------------------------------------------------------------
def _pfyl_kernel(cp_ref, w_ref, z_ref, o_ref, *, epsilon: float, n_samples: int):
    cp = cp_ref[...]            # (T*B, D) predicted costs
    w = w_ref[...]              # (T*B, D) true solutions
    acc = jnp.zeros_like(cp)
    for s in range(n_samples):  # static, small
        ptb = cp + epsilon * z_ref[s]
        # TODO(synk): real combinatorial solver not expressible; box-LP oracle stand-in.
        acc = acc + jnp.where(ptb < 0.0, 1.0, 0.0)
    e_sol = acc * (1.0 / float(n_samples))        # E[w*(cp + eps*Z)]
    diff = w - e_sol                              # MINIMIZE sense
    o_ref[...] = jnp.sum(diff * cp, axis=-1, keepdims=True)   # (T*B, 1)


def pallas_pfyl(cp_all, w_all, noise, epsilon):
    """cp_all/w_all: (T, B, D); noise: (S, T*B, D) N(0,1); returns (T,) per-task batch means."""
    T, B, D = cp_all.shape
    TB = T * B
    cp_flat = cp_all.reshape(TB, D).astype(jnp.float32)
    w_flat = w_all.reshape(TB, D).astype(jnp.float32)
    out = pl.pallas_call(
        functools.partial(_pfyl_kernel, epsilon=float(epsilon),
                          n_samples=noise.shape[0]),
        out_shape=jax.ShapeDtypeStruct((TB, 1), jnp.float32),
    )(cp_flat, w_flat, noise)
    return out.reshape(T, B).mean(axis=1)         # per-task .mean() over the batch


# ----------------------------------------------------------------------------
# Plain-JAX glue: NHWC im2col, maxpool, parameter setup
# ----------------------------------------------------------------------------
def im2col_nhwc(x, kh, kw, stride, pad):
    """x: (N, H, W, C) -> (N*Ho*Wo, kh*kw*C); K ordering matches w.transpose(2,3,1,0)."""
    if pad > 0:
        x = jnp.pad(x, ((0, 0), (pad, pad), (pad, pad), (0, 0)))
    N, H, W, C = x.shape
    Ho = (H - kh) // stride + 1
    Wo = (W - kw) // stride + 1
    cols = []
    for i in range(kh):
        for j in range(kw):
            cols.append(x[:, i:i + stride * (Ho - 1) + 1:stride,
                             j:j + stride * (Wo - 1) + 1:stride, :])
    patches = jnp.stack(cols, axis=3)                 # (N, Ho, Wo, kh*kw, C)
    return patches.reshape(N * Ho * Wo, kh * kw * C), Ho, Wo


def conv_bn_act(x, w, scale, shift, stride, pad, relu=True, residual=None):
    """NHWC Conv2d (no bias) + folded BN + optional fused residual + ReLU (one Pallas GEMM)."""
    N = x.shape[0]
    Cout, Cin, kh, kw = w.shape
    patches, Ho, Wo = im2col_nhwc(x.astype(jnp.bfloat16), kh, kw, stride, pad)
    # Pre-fold the BN scale into the weight columns so the epilogue is shift-only.
    wmat = w.transpose(2, 3, 1, 0).reshape(kh * kw * Cin, Cout) * scale[None, :]
    out = pallas_gemm_fused(patches, wmat, shift, relu=relu, residual=residual)
    return out.reshape(N, Ho, Wo, Cout)               # NHWC


def maxpool_3x3_s2(x):
    # TODO(synk): MaxPool2d(3, stride=2, pad=1) kept as plain-JAX reduce_window glue (NHWC).
    return jax.lax.reduce_window(
        x, -jnp.inf, jax.lax.max,
        window_dimensions=(1, 3, 3, 1), window_strides=(1, 2, 2, 1),
        padding=((0, 0), (1, 1), (1, 1), (0, 0)))


def basic_block(x, p):
    """ResNet BasicBlock(64 -> 64), BN folded, residual add fused in the 2nd GEMM epilogue."""
    N, H, W, C = x.shape
    h = conv_bn_act(x, p["w1"], p["s1"], p["b1"], stride=1, pad=1, relu=True)
    res2d = x.reshape(N * H * W, C)                   # identity branch (NHWC, no transpose)
    h = conv_bn_act(h, p["w2"], p["s2"], p["b2"], stride=1, pad=1, relu=True,
                    residual=res2d)
    return h


def init_params(key, n_tasks):
    keys = iter(jax.random.split(key, 64))

    def conv_w(cout, cin, kh, kw):
        fan_in = cin * kh * kw
        return jax.random.normal(next(keys), (cout, cin, kh, kw),
                                 jnp.float32) * jnp.sqrt(2.0 / fan_in)

    def bn_fold(c):  # eval-mode BatchNorm folded to per-channel scale/shift
        gamma = 1.0 + 0.1 * jax.random.normal(next(keys), (c,), jnp.float32)
        beta = 0.1 * jax.random.normal(next(keys), (c,), jnp.float32)
        mean = 0.1 * jax.random.normal(next(keys), (c,), jnp.float32)
        var = 1.0 + 0.1 * jnp.abs(jax.random.normal(next(keys), (c,), jnp.float32))
        scale = gamma / jnp.sqrt(var + 1e-5)
        shift = beta - mean * scale
        return scale, shift

    p = {"conv1_w": conv_w(64, 3, 7, 7)}
    p["bn1_scale"], p["bn1_shift"] = bn_fold(64)

    def make_block():
        w1 = conv_w(64, 64, 3, 3); s1, b1 = bn_fold(64)
        w2 = conv_w(64, 64, 3, 3); s2, b2 = bn_fold(64)
        return dict(w1=w1, s1=s1, b1=b1, w2=w2, s2=s2, b2=b2)

    p["block1"] = make_block()
    p["block2"] = make_block()
    p["heads"] = []
    for _ in range(n_tasks):
        p["heads"].append(dict(w=conv_w(1, 64, 1, 1),
                               b=0.1 * jax.random.normal(next(keys), (1,), jnp.float32)))
    return p


def nnet_backbone(params, x_nhwc):
    """Truncated ResNet18 (conv1/bn/relu/maxpool/layer1), shared across ALL tasks' inputs."""
    h = conv_bn_act(x_nhwc, params["conv1_w"], params["bn1_scale"], params["bn1_shift"],
                    stride=2, pad=3, relu=True)
    h = maxpool_3x3_s2(h)
    h = basic_block(h, params["block1"])
    h = basic_block(h, params["block2"])
    # AdaptiveMaxPool2d((k,k)) is the identity here since the feature map is already k x k.
    return h                                           # (T*B, k, k, 64)


def heads_forward(params, feat, n_tasks, batch):
    """All per-task 1x1-conv heads fused into ONE GEMM (N = n_tasks); take the diagonal."""
    N, kH, kW, C = feat.shape
    head_w = jnp.stack([h["w"].reshape(-1) for h in params["heads"]], axis=1)   # (C, T)
    head_b = jnp.concatenate([h["b"] for h in params["heads"]], axis=0)         # (T,)
    feat2d = feat.reshape(N * kH * kW, C)
    out = pallas_gemm_fused(feat2d, head_w, head_b, relu=False)                 # (T*B*k*k, T)
    out = out.reshape(n_tasks, batch, kH * kW, n_tasks)
    idx = jnp.arange(n_tasks)
    return out[idx, :, :, idx]                          # (T, B, k*k): head i on task-i images


def partial_resnet_pfyl_forward(params, xs, cs, ws, zs, noise_key,
                                n_samples=1, epsilon=1.0):
    """xs: (T, B, 3, H, W);  ws: (T, B, D) true solutions;  cs, zs unused (signature parity)."""
    del cs, zs
    T, B, C, H, W = xs.shape
    # One backbone pass over all tasks, NHWC end-to-end (single NCHW->NHWC transpose).
    x = xs.reshape(T * B, C, H, W).transpose(0, 2, 3, 1)
    feat = nnet_backbone(params, x)                     # (T*B, k, k, 64)
    cp_all = heads_forward(params, feat, T, B)          # (T, B, D)
    D = cp_all.shape[-1]
    # TODO(synk): noise could be drawn in-kernel (pltpu.prng_*) to skip this HBM input;
    #             kept host-side jax.random for exact N(0,1) semantics.
    noise = jax.random.normal(noise_key, (n_samples, T * B, D), jnp.float32)
    return pallas_pfyl(cp_all, ws, noise, epsilon)      # (T,)


# ----------------------------------------------------------------------------
if __name__ == "__main__":
    n_tasks, B, C, H, W = 2, 2, 3, 16, 16
    n_samples, epsilon = 3, 1.0
    D = 16  # 4x4 cost map after conv1(s2) + maxpool(s2) on a 16x16 input

    key = jax.random.PRNGKey(0)
    k_param, k_x, k_w, k_c, k_noise = jax.random.split(key, 5)

    params = init_params(k_param, n_tasks)
    xs = jax.random.normal(k_x, (n_tasks, B, C, H, W), jnp.float32)
    ws = (jax.random.uniform(k_w, (n_tasks, B, D)) < 0.5).astype(jnp.float32)
    cs = jax.random.normal(k_c, (n_tasks, B, D), jnp.float32)   # unused by forward
    zs = jnp.zeros((n_tasks, B, 1), jnp.float32)                # unused by forward

    fwd = jax.jit(functools.partial(partial_resnet_pfyl_forward,
                                    n_samples=n_samples, epsilon=epsilon))
    loss = fwd(params, xs, cs, ws, zs, k_noise)
    loss = jax.block_until_ready(loss)
    assert loss.shape == (n_tasks,)
    print("KERNEL_OK")
</pallas_src>

<mosaic_0001>
module attributes {stable_mosaic.version = 11 : i64} {
  func.func @_gemm_epilogue_kernel(%arg0: i32, %arg1: i32, %arg2: i32, %arg3: memref<256x256xbf16, #tpu.memory_space<vmem>>, %arg4: memref<256x128xbf16, #tpu.memory_space<vmem>>, %arg5: memref<1x128xf32, #tpu.memory_space<vmem>>, %arg6: memref<256x128xf32, #tpu.memory_space<vmem>>, %arg7: memref<256x128xf32, #tpu.memory_space<vmem>>) attributes {dimension_semantics = [#tpu.dimension_semantics<parallel>, #tpu.dimension_semantics<parallel>, #tpu.dimension_semantics<arbitrary>], iteration_bounds = array<i64: 1, 1, 1>, scalar_prefetch = 0 : i64, scratch_operands = 1 : i64, tpu.core_type = #tpu.core_type<tc>, window_params = [{transform_indices = @transform_0, window_bounds = array<i64: 256, 256>}, {transform_indices = @transform_1, window_bounds = array<i64: 256, 128>}, {transform_indices = @transform_2, window_bounds = array<i64: 1, 128>}, {transform_indices = @transform_3, window_bounds = array<i64: 256, 128>}]} {
    %c0_i32 = arith.constant 0 : i32
    %0 = arith.cmpi eq, %arg2, %c0_i32 : i32
    %1 = arith.extui %0 : i1 to i32
    %c0_i32_0 = arith.constant 0 : i32
    %2 = arith.cmpi ne, %1, %c0_i32_0 : i32
    scf.if %2 {
      %cst_10 = arith.constant 0.000000e+00 : f32
      %12 = vector.broadcast %cst_10 : f32 to vector<256x128xf32>
      %c0_11 = arith.constant 0 : index
      %c0_12 = arith.constant 0 : index
      %13 = vector.load %arg7[%c0_11, %c0_12] : memref<256x128xf32, #tpu.memory_space<vmem>>, vector<256x128xf32>
      tpu.vector_store %arg7[%c0_11, %c0_12], %12 {strides = array<i32>} : memref<256x128xf32, #tpu.memory_space<vmem>>, vector<256x128xf32>,
    } else {
    }
    %c0 = arith.constant 0 : index
    %c0_1 = arith.constant 0 : index
    %3 = vector.load %arg7[%c0, %c0_1] : memref<256x128xf32, #tpu.memory_space<vmem>>, vector<256x128xf32>
    %c0_2 = arith.constant 0 : index
    %c0_3 = arith.constant 0 : index
    %4 = vector.load %arg3[%c0_2, %c0_3] : memref<256x256xbf16, #tpu.memory_space<vmem>>, vector<256x256xbf16>
    %c0_4 = arith.constant 0 : index
    %c0_5 = arith.constant 0 : index
    %5 = vector.load %arg4[%c0_4, %c0_5] : memref<256x128xbf16, #tpu.memory_space<vmem>>, vector<256x128xbf16>
    %cst = arith.constant dense<0.000000e+00> : vector<256x128xf32>
    %6 = tpu.matmul %4, %5, %cst {dimension_numbers = #tpu.dot_dimension_numbers<[1], [0], [0], [1], [0, 0, 1, 1], [], []>} : vector<256x256xbf16>, vector<256x128xbf16>, vector<256x128xf32> -> vector<256x128xf32>
    %7 = arith.addf %3, %6 : vector<256x128xf32>
    %c0_6 = arith.constant 0 : index
    %c0_7 = arith.constant 0 : index
    %8 = vector.load %arg7[%c0_6, %c0_7] : memref<256x128xf32, #tpu.memory_space<vmem>>, vector<256x128xf32>
    tpu.vector_store %arg7[%c0_6, %c0_7], %7 {strides = array<i32>} : memref<256x128xf32, #tpu.memory_space<vmem>>, vector<256x128xf32>,
    %c0_i32_8 = arith.constant 0 : i32
    %9 = arith.cmpi eq, %arg2, %c0_i32_8 : i32
    %10 = arith.extui %9 : i1 to i32
    %c0_i32_9 = arith.constant 0 : i32
    %11 = arith.cmpi ne, %10, %c0_i32_9 : i32
    scf.if %11 {
      %c0_10 = arith.constant 0 : index
      %c0_11 = arith.constant 0 : index
      %12 = vector.load %arg7[%c0_10, %c0_11] : memref<256x128xf32, #tpu.memory_space<vmem>>, vector<256x128xf32>
      %c0_12 = arith.constant 0 : index
      %c0_13 = arith.constant 0 : index
      %13 = vector.load %arg5[%c0_12, %c0_13] : memref<1x128xf32, #tpu.memory_space<vmem>>, vector<1x128xf32>
      %14 = vector.broadcast %13 : vector<1x128xf32> to vector<256x128xf32>
      %15 = arith.addf %12, %14 : vector<256x128xf32>
      %cst_14 = arith.constant 0.000000e+00 : f32
      %16 = vector.broadcast %cst_14 : f32 to vector<256x128xf32>
      %17 = arith.maximumf %15, %16 : vector<256x128xf32>
      %c0_15 = arith.constant 0 : index
      %c0_16 = arith.constant 0 : index
      %18 = vector.load %arg6[%c0_15, %c0_16] : memref<256x128xf32, #tpu.memory_space<vmem>>, vector<256x128xf32>
      tpu.vector_store %arg6[%c0_15, %c0_16], %17 {strides = array<i32>} : memref<256x128xf32, #tpu.memory_space<vmem>>, vector<256x128xf32>,
    } else {
    }
    return
  }
  func.func @transform_0(%arg0: i32, %arg1: i32, %arg2: i32) -> (i32, i32) {
    %c0_i32 = arith.constant 0 : i32
    return %arg0, %arg2 : i32, i32
  }
  func.func @transform_1(%arg0: i32, %arg1: i32, %arg2: i32) -> (i32, i32) {
    %c0_i32 = arith.constant 0 : i32
    return %arg2, %arg1 : i32, i32
  }
  func.func @transform_2(%arg0: i32, %arg1: i32, %arg2: i32) -> (i32, i32) {
    %c0_i32 = arith.constant 0 : i32
    %c0_i32_0 = arith.constant 0 : i32
    return %c0_i32, %arg1 : i32, i32
  }
  func.func @transform_3(%arg0: i32, %arg1: i32, %arg2: i32) -> (i32, i32) {
    %c0_i32 = arith.constant 0 : i32
    return %arg0, %arg1 : i32, i32
  }
}

module attributes {stable_mosaic.version = 11 : i64} {
  func.func @_gemm_epilogue_kernel(%arg0: i32, %arg1: i32, %arg2: i32, %arg3: memref<64x640xbf16, #tpu.memory_space<vmem>>, %arg4: memref<640x128xbf16, #tpu.memory_space<vmem>>, %arg5: memref<1x128xf32, #tpu.memory_space<vmem>>, %arg6: memref<64x128xf32, #tpu.memory_space<vmem>>, %arg7: memref<64x128xf32, #tpu.memory_space<vmem>>) attributes {dimension_semantics = [#tpu.dimension_semantics<parallel>, #tpu.dimension_semantics<parallel>, #tpu.dimension_semantics<arbitrary>], iteration_bounds = array<i64: 1, 1, 1>, scalar_prefetch = 0 : i64, scratch_operands = 1 : i64, tpu.core_type = #tpu.core_type<tc>, window_params = [{transform_indices = @transform_0, window_bounds = array<i64: 64, 640>}, {transform_indices = @transform_1, window_bounds = array<i64: 640, 128>}, {transform_indices = @transform_2, window_bounds = array<i64: 1, 128>}, {transform_indices = @transform_3, window_bounds = array<i64: 64, 128>}]} {
    %c0_i32 = arith.constant 0 : i32
    %0 = arith.cmpi eq, %arg2, %c0_i32 : i32
    %1 = arith.extui %0 : i1 to i32
    %c0_i32_0 = arith.constant 0 : i32
    %2 = arith.cmpi ne, %1, %c0_i32_0 : i32
    scf.if %2 {
      %cst_10 = arith.constant 0.000000e+00 : f32
      %12 = vector.broadcast %cst_10 : f32 to vector<64x128xf32>
      %c0_11 = arith.constant 0 : index
      %c0_12 = arith.constant 0 : index
      %13 = vector.load %arg7[%c0_11, %c0_12] : memref<64x128xf32, #tpu.memory_space<vmem>>, vector<64x128xf32>
      tpu.vector_store %arg7[%c0_11, %c0_12], %12 {strides = array<i32>} : memref<64x128xf32, #tpu.memory_space<vmem>>, vector<64x128xf32>,
    } else {
    }
    %c0 = arith.constant 0 : index
    %c0_1 = arith.constant 0 : index
    %3 = vector.load %arg7[%c0, %c0_1] : memref<64x128xf32, #tpu.memory_space<vmem>>, vector<64x128xf32>
    %c0_2 = arith.constant 0 : index
    %c0_3 = arith.constant 0 : index
    %4 = vector.load %arg3[%c0_2, %c0_3] : memref<64x640xbf16, #tpu.memory_space<vmem>>, vector<64x640xbf16>
    %c0_4 = arith.constant 0 : index
    %c0_5 = arith.constant 0 : index
    %5 = vector.load %arg4[%c0_4, %c0_5] : memref<640x128xbf16, #tpu.memory_space<vmem>>, vector<640x128xbf16>
    %cst = arith.constant dense<0.000000e+00> : vector<64x128xf32>
    %6 = tpu.matmul %4, %5, %cst {dimension_numbers = #tpu.dot_dimension_numbers<[1], [0], [0], [1], [0, 0, 1, 1], [], []>} : vector<64x640xbf16>, vector<640x128xbf16>, vector<64x128xf32> -> vector<64x128xf32>
    %7 = arith.addf %3, %6 : vector<64x128xf32>
    %c0_6 = arith.constant 0 : index
    %c0_7 = arith.constant 0 : index
    %8 = vector.load %arg7[%c0_6, %c0_7] : memref<64x128xf32, #tpu.memory_space<vmem>>, vector<64x128xf32>
    tpu.vector_store %arg7[%c0_6, %c0_7], %7 {strides = array<i32>} : memref<64x128xf32, #tpu.memory_space<vmem>>, vector<64x128xf32>,
    %c0_i32_8 = arith.constant 0 : i32
    %9 = arith.cmpi eq, %arg2, %c0_i32_8 : i32
    %10 = arith.extui %9 : i1 to i32
    %c0_i32_9 = arith.constant 0 : i32
    %11 = arith.cmpi ne, %10, %c0_i32_9 : i32
    scf.if %11 {
      %c0_10 = arith.constant 0 : index
      %c0_11 = arith.constant 0 : index
      %12 = vector.load %arg7[%c0_10, %c0_11] : memref<64x128xf32, #tpu.memory_space<vmem>>, vector<64x128xf32>
      %c0_12 = arith.constant 0 : index
      %c0_13 = arith.constant 0 : index
      %13 = vector.load %arg5[%c0_12, %c0_13] : memref<1x128xf32, #tpu.memory_space<vmem>>, vector<1x128xf32>
      %14 = vector.broadcast %13 : vector<1x128xf32> to vector<64x128xf32>
      %15 = arith.addf %12, %14 : vector<64x128xf32>
      %cst_14 = arith.constant 0.000000e+00 : f32
      %16 = vector.broadcast %cst_14 : f32 to vector<64x128xf32>
      %17 = arith.maximumf %15, %16 : vector<64x128xf32>
      %c0_15 = arith.constant 0 : index
      %c0_16 = arith.constant 0 : index
      %18 = vector.load %arg6[%c0_15, %c0_16] : memref<64x128xf32, #tpu.memory_space<vmem>>, vector<64x128xf32>
      tpu.vector_store %arg6[%c0_15, %c0_16], %17 {strides = array<i32>} : memref<64x128xf32, #tpu.memory_space<vmem>>, vector<64x128xf32>,
    } else {
    }
    return
  }
  func.func @transform_0(%arg0: i32, %arg1: i32, %arg2: i32) -> (i32, i32) {
    %c0_i32 = arith.constant 0 : i32
    return %arg0, %arg2 : i32, i32
  }
  func.func @transform_1(%arg0: i32, %arg1: i32, %arg2: i32) -> (i32, i32) {
    %c0_i32 = arith.constant 0 : i32
    return %arg2, %arg1 : i32, i32
  }
  func.func @transform_2(%arg0: i32, %arg1: i32, %arg2: i32) -> (i32, i32) {
    %c0_i32 = arith.constant 0 : i32
    %c0_i32_0 = arith.constant 0 : i32
    return %c0_i32, %arg1 : i32, i32
  }
  func.func @transform_3(%arg0: i32, %arg1: i32, %arg2: i32) -> (i32, i32) {
    %c0_i32 = arith.constant 0 : i32
    return %arg0, %arg1 : i32, i32
  }
}

module attributes {stable_mosaic.version = 11 : i64} {
  func.func @_gemm_epilogue_kernel(%arg0: i32, %arg1: i32, %arg2: i32, %arg3: memref<64x640xbf16, #tpu.memory_space<vmem>>, %arg4: memref<640x128xbf16, #tpu.memory_space<vmem>>, %arg5: memref<1x128xf32, #tpu.memory_space<vmem>>, %arg6: memref<64x128xf32, #tpu.memory_space<vmem>>, %arg7: memref<64x128xf32, #tpu.memory_space<vmem>>, %arg8: memref<64x128xf32, #tpu.memory_space<vmem>>) attributes {dimension_semantics = [#tpu.dimension_semantics<parallel>, #tpu.dimension_semantics<parallel>, #tpu.dimension_semantics<arbitrary>], iteration_bounds = array<i64: 1, 1, 1>, scalar_prefetch = 0 : i64, scratch_operands = 1 : i64, tpu.core_type = #tpu.core_type<tc>, window_params = [{transform_indices = @transform_0, window_bounds = array<i64: 64, 640>}, {transform_indices = @transform_1, window_bounds = array<i64: 640, 128>}, {transform_indices = @transform_2, window_bounds = array<i64: 1, 128>}, {transform_indices = @transform_3, window_bounds = array<i64: 64, 128>}, {transform_indices = @transform_4, window_bounds = array<i64: 64, 128>}]} {
    %c0_i32 = arith.constant 0 : i32
    %0 = arith.cmpi eq, %arg2, %c0_i32 : i32
    %1 = arith.extui %0 : i1 to i32
    %c0_i32_0 = arith.constant 0 : i32
    %2 = arith.cmpi ne, %1, %c0_i32_0 : i32
    scf.if %2 {
      %cst_10 = arith.constant 0.000000e+00 : f32
      %12 = vector.broadcast %cst_10 : f32 to vector<64x128xf32>
      %c0_11 = arith.constant 0 : index
      %c0_12 = arith.constant 0 : index
      %13 = vector.load %arg8[%c0_11, %c0_12] : memref<64x128xf32, #tpu.memory_space<vmem>>, vector<64x128xf32>
      tpu.vector_store %arg8[%c0_11, %c0_12], %12 {strides = array<i32>} : memref<64x128xf32, #tpu.memory_space<vmem>>, vector<64x128xf32>,
    } else {
    }
    %c0 = arith.constant 0 : index
    %c0_1 = arith.constant 0 : index
    %3 = vector.load %arg8[%c0, %c0_1] : memref<64x128xf32, #tpu.memory_space<vmem>>, vector<64x128xf32>
    %c0_2 = arith.constant 0 : index
    %c0_3 = arith.constant 0 : index
    %4 = vector.load %arg3[%c0_2, %c0_3] : memref<64x640xbf16, #tpu.memory_space<vmem>>, vector<64x640xbf16>
    %c0_4 = arith.constant 0 : index
    %c0_5 = arith.constant 0 : index
    %5 = vector.load %arg4[%c0_4, %c0_5] : memref<640x128xbf16, #tpu.memory_space<vmem>>, vector<640x128xbf16>
    %cst = arith.constant dense<0.000000e+00> : vector<64x128xf32>
    %6 = tpu.matmul %4, %5, %cst {dimension_numbers = #tpu.dot_dimension_numbers<[1], [0], [0], [1], [0, 0, 1, 1], [], []>} : vector<64x640xbf16>, vector<640x128xbf16>, vector<64x128xf32> -> vector<64x128xf32>
    %7 = arith.addf %3, %6 : vector<64x128xf32>
    %c0_6 = arith.constant 0 : index
    %c0_7 = arith.constant 0 : index
    %8 = vector.load %arg8[%c0_6, %c0_7] : memref<64x128xf32, #tpu.memory_space<vmem>>, vector<64x128xf32>
    tpu.vector_store %arg8[%c0_6, %c0_7], %7 {strides = array<i32>} : memref<64x128xf32, #tpu.memory_space<vmem>>, vector<64x128xf32>,
    %c0_i32_8 = arith.constant 0 : i32
    %9 = arith.cmpi eq, %arg2, %c0_i32_8 : i32
    %10 = arith.extui %9 : i1 to i32
    %c0_i32_9 = arith.constant 0 : i32
    %11 = arith.cmpi ne, %10, %c0_i32_9 : i32
    scf.if %11 {
      %c0_10 = arith.constant 0 : index
      %c0_11 = arith.constant 0 : index
      %12 = vector.load %arg8[%c0_10, %c0_11] : memref<64x128xf32, #tpu.memory_space<vmem>>, vector<64x128xf32>
      %c0_12 = arith.constant 0 : index
      %c0_13 = arith.constant 0 : index
      %13 = vector.load %arg5[%c0_12, %c0_13] : memref<1x128xf32, #tpu.memory_space<vmem>>, vector<1x128xf32>
      %14 = vector.broadcast %13 : vector<1x128xf32> to vector<64x128xf32>
      %15 = arith.addf %12, %14 : vector<64x128xf32>
      %c0_14 = arith.constant 0 : index
      %c0_15 = arith.constant 0 : index
      %16 = vector.load %arg6[%c0_14, %c0_15] : memref<64x128xf32, #tpu.memory_space<vmem>>, vector<64x128xf32>
      %17 = arith.addf %15, %16 : vector<64x128xf32>
      %cst_16 = arith.constant 0.000000e+00 : f32
      %18 = vector.broadcast %cst_16 : f32 to vector<64x128xf32>
      %19 = arith.maximumf %17, %18 : vector<64x128xf32>
      %c0_17 = arith.constant 0 : index
      %c0_18 = arith.constant 0 : index
      %20 = vector.load %arg7[%c0_17, %c0_18] : memref<64x128xf32, #tpu.memory_space<vmem>>, vector<64x128xf32>
      tpu.vector_store %arg7[%c0_17, %c0_18], %19 {strides = array<i32>} : memref<64x128xf32, #tpu.memory_space<vmem>>, vector<64x128xf32>,
    } else {
    }
    return
  }
  func.func @transform_0(%arg0: i32, %arg1: i32, %arg2: i32) -> (i32, i32) {
    %c0_i32 = arith.constant 0 : i32
    return %arg0, %arg2 : i32, i32
  }
  func.func @transform_1(%arg0: i32, %arg1: i32, %arg2: i32) -> (i32, i32) {
    %c0_i32 = arith.constant 0 : i32
    return %arg2, %arg1 : i32, i32
  }
  func.func @transform_2(%arg0: i32, %arg1: i32, %arg2: i32) -> (i32, i32) {
    %c0_i32 = arith.constant 0 : i32
    %c0_i32_0 = arith.constant 0 : i32
    return %c0_i32, %arg1 : i32, i32
  }
  func.func @transform_3(%arg0: i32, %arg1: i32, %arg2: i32) -> (i32, i32) {
    %c0_i32 = arith.constant 0 : i32
    return %arg0, %arg1 : i32, i32
  }
  func.func @transform_4(%arg0: i32, %arg1: i32, %arg2: i32) -> (i32, i32) {
    %c0_i32 = arith.constant 0 : i32
    return %arg0, %arg1 : i32, i32
  }
}

module attributes {stable_mosaic.version = 11 : i64} {
  func.func @_gemm_epilogue_kernel(%arg0: i32, %arg1: i32, %arg2: i32, %arg3: memref<64x128xbf16, #tpu.memory_space<vmem>>, %arg4: memref<128x128xbf16, #tpu.memory_space<vmem>>, %arg5: memref<1x128xf32, #tpu.memory_space<vmem>>, %arg6: memref<64x128xf32, #tpu.memory_space<vmem>>, %arg7: memref<64x128xf32, #tpu.memory_space<vmem>>) attributes {dimension_semantics = [#tpu.dimension_semantics<parallel>, #tpu.dimension_semantics<parallel>, #tpu.dimension_semantics<arbitrary>], iteration_bounds = array<i64: 1, 1, 1>, scalar_prefetch = 0 : i64, scratch_operands = 1 : i64, tpu.core_type = #tpu.core_type<tc>, window_params = [{transform_indices = @transform_0, window_bounds = array<i64: 64, 128>}, {transform_indices = @transform_1, window_bounds = array<i64: 128, 128>}, {transform_indices = @transform_2, window_bounds = array<i64: 1, 128>}, {transform_indices = @transform_3, window_bounds = array<i64: 64, 128>}]} {
    %c0_i32 = arith.constant 0 : i32
    %0 = arith.cmpi eq, %arg2, %c0_i32 : i32
    %1 = arith.extui %0 : i1 to i32
    %c0_i32_0 = arith.constant 0 : i32
    %2 = arith.cmpi ne, %1, %c0_i32_0 : i32
    scf.if %2 {
      %cst_10 = arith.constant 0.000000e+00 : f32
      %12 = vector.broadcast %cst_10 : f32 to vector<64x128xf32>
      %c0_11 = arith.constant 0 : index
      %c0_12 = arith.constant 0 : index
      %13 = vector.load %arg7[%c0_11, %c0_12] : memref<64x128xf32, #tpu.memory_space<vmem>>, vector<64x128xf32>
      tpu.vector_store %arg7[%c0_11, %c0_12], %12 {strides = array<i32>} : memref<64x128xf32, #tpu.memory_space<vmem>>, vector<64x128xf32>,
    } else {
    }
    %c0 = arith.constant 0 : index
    %c0_1 = arith.constant 0 : index
    %3 = vector.load %arg7[%c0, %c0_1] : memref<64x128xf32, #tpu.memory_space<vmem>>, vector<64x128xf32>
    %c0_2 = arith.constant 0 : index
    %c0_3 = arith.constant 0 : index
    %4 = vector.load %arg3[%c0_2, %c0_3] : memref<64x128xbf16, #tpu.memory_space<vmem>>, vector<64x128xbf16>
    %c0_4 = arith.constant 0 : index
    %c0_5 = arith.constant 0 : index
    %5 = vector.load %arg4[%c0_4, %c0_5] : memref<128x128xbf16, #tpu.memory_space<vmem>>, vector<128x128xbf16>
    %cst = arith.constant dense<0.000000e+00> : vector<64x128xf32>
    %6 = tpu.matmul %4, %5, %cst {dimension_numbers = #tpu.dot_dimension_numbers<[1], [0], [0], [1], [0, 0, 1, 1], [], []>} : vector<64x128xbf16>, vector<128x128xbf16>, vector<64x128xf32> -> vector<64x128xf32>
    %7 = arith.addf %3, %6 : vector<64x128xf32>
    %c0_6 = arith.constant 0 : index
    %c0_7 = arith.constant 0 : index
    %8 = vector.load %arg7[%c0_6, %c0_7] : memref<64x128xf32, #tpu.memory_space<vmem>>, vector<64x128xf32>
    tpu.vector_store %arg7[%c0_6, %c0_7], %7 {strides = array<i32>} : memref<64x128xf32, #tpu.memory_space<vmem>>, vector<64x128xf32>,
    %c0_i32_8 = arith.constant 0 : i32
    %9 = arith.cmpi eq, %arg2, %c0_i32_8 : i32
    %10 = arith.extui %9 : i1 to i32
    %c0_i32_9 = arith.constant 0 : i32
    %11 = arith.cmpi ne, %10, %c0_i32_9 : i32
    scf.if %11 {
      %c0_10 = arith.constant 0 : index
      %c0_11 = arith.constant 0 : index
      %12 = vector.load %arg7[%c0_10, %c0_11] : memref<64x128xf32, #tpu.memory_space<vmem>>, vector<64x128xf32>
      %c0_12 = arith.constant 0 : index
      %c0_13 = arith.constant 0 : index
      %13 = vector.load %arg5[%c0_12, %c0_13] : memref<1x128xf32, #tpu.memory_space<vmem>>, vector<1x128xf32>
      %14 = vector.broadcast %13 : vector<1x128xf32> to vector<64x128xf32>
      %15 = arith.addf %12, %14 : vector<64x128xf32>
      %c0_14 = arith.constant 0 : index
      %c0_15 = arith.constant 0 : index
      %16 = vector.load %arg6[%c0_14, %c0_15] : memref<64x128xf32, #tpu.memory_space<vmem>>, vector<64x128xf32>
      tpu.vector_store %arg6[%c0_14, %c0_15], %15 {strides = array<i32>} : memref<64x128xf32, #tpu.memory_space<vmem>>, vector<64x128xf32>,
    } else {
    }
    return
  }
  func.func @transform_0(%arg0: i32, %arg1: i32, %arg2: i32) -> (i32, i32) {
    %c0_i32 = arith.constant 0 : i32
    return %arg0, %arg2 : i32, i32
  }
  func.func @transform_1(%arg0: i32, %arg1: i32, %arg2: i32) -> (i32, i32) {
    %c0_i32 = arith.constant 0 : i32
    return %arg2, %arg1 : i32, i32
  }
  func.func @transform_2(%arg0: i32, %arg1: i32, %arg2: i32) -> (i32, i32) {
    %c0_i32 = arith.constant 0 : i32
    %c0_i32_0 = arith.constant 0 : i32
    return %c0_i32, %arg1 : i32, i32
  }
  func.func @transform_3(%arg0: i32, %arg1: i32, %arg2: i32) -> (i32, i32) {
    %c0_i32 = arith.constant 0 : i32
    return %arg0, %arg1 : i32, i32
  }
}

module attributes {stable_mosaic.version = 11 : i64} {
  func.func @_pfyl_kernel(%arg0: memref<4x16xf32, #tpu.memory_space<vmem>>, %arg1: memref<4x16xf32, #tpu.memory_space<vmem>>, %arg2: memref<3x4x16xf32, #tpu.memory_space<vmem>>, %arg3: memref<4x1xf32, #tpu.memory_space<vmem>>) attributes {dimension_semantics = [], scalar_prefetch = 0 : i64, scratch_operands = 0 : i64, tpu.core_type = #tpu.core_type<tc>} {
    %c0 = arith.constant 0 : index
    %c0_0 = arith.constant 0 : index
    %0 = vector.load %arg0[%c0, %c0_0] : memref<4x16xf32, #tpu.memory_space<vmem>>, vector<4x16xf32>
    %c0_1 = arith.constant 0 : index
    %c0_2 = arith.constant 0 : index
    %1 = vector.load %arg1[%c0_1, %c0_2] : memref<4x16xf32, #tpu.memory_space<vmem>>, vector<4x16xf32>
    %cst = arith.constant 0.000000e+00 : f32
    %2 = vector.broadcast %cst : f32 to vector<4x16xf32>
    %c0_3 = arith.constant 0 : index
    %c0_4 = arith.constant 0 : index
    %c0_5 = arith.constant 0 : index
    %3 = vector.load %arg2[%c0_3, %c0_4, %c0_5] : memref<3x4x16xf32, #tpu.memory_space<vmem>>, vector<1x4x16xf32>
    %4 = vector.shape_cast %3 : vector<1x4x16xf32> to vector<4x16xf32>
    %cst_6 = arith.constant 1.000000e+00 : f32
    %5 = vector.broadcast %cst_6 : f32 to vector<4x16xf32>
    %6 = arith.mulf %5, %4 : vector<4x16xf32>
    %7 = arith.addf %0, %6 : vector<4x16xf32>
    %cst_7 = arith.constant 0.000000e+00 : f32
    %8 = vector.broadcast %cst_7 : f32 to vector<4x16xf32>
    %9 = arith.cmpf olt, %7, %8 : vector<4x16xf32>
    %cst_8 = arith.constant 1.000000e+00 : f32
    %cst_9 = arith.constant 0.000000e+00 : f32
    %10 = vector.broadcast %cst_8 : f32 to vector<4x16xf32>
    %11 = vector.broadcast %cst_9 : f32 to vector<4x16xf32>
    %12 = arith.select %9, %10, %11 : vector<4x16xi1>, vector<4x16xf32>
    %13 = arith.addf %2, %12 : vector<4x16xf32>
    %c1 = arith.constant 1 : index
    %c0_10 = arith.constant 0 : index
    %c0_11 = arith.constant 0 : index
    %14 = vector.load %arg2[%c1, %c0_10, %c0_11] : memref<3x4x16xf32, #tpu.memory_space<vmem>>, vector<1x4x16xf32>
    %15 = vector.shape_cast %14 : vector<1x4x16xf32> to vector<4x16xf32>
    %cst_12 = arith.constant 1.000000e+00 : f32
    %16 = vector.broadcast %cst_12 : f32 to vector<4x16xf32>
    %17 = arith.mulf %16, %15 : vector<4x16xf32>
    %18 = arith.addf %0, %17 : vector<4x16xf32>
    %cst_13 = arith.constant 0.000000e+00 : f32
    %19 = vector.broadcast %cst_13 : f32 to vector<4x16xf32>
    %20 = arith.cmpf olt, %18, %19 : vector<4x16xf32>
    %cst_14 = arith.constant 1.000000e+00 : f32
    %cst_15 = arith.constant 0.000000e+00 : f32
    %21 = vector.broadcast %cst_14 : f32 to vector<4x16xf32>
    %22 = vector.broadcast %cst_15 : f32 to vector<4x16xf32>
    %23 = arith.select %20, %21, %22 : vector<4x16xi1>, vector<4x16xf32>
    %24 = arith.addf %13, %23 : vector<4x16xf32>
    %c2 = arith.constant 2 : index
    %c0_16 = arith.constant 0 : index
    %c0_17 = arith.constant 0 : index
    %25 = vector.load %arg2[%c2, %c0_16, %c0_17] : memref<3x4x16xf32, #tpu.memory_space<vmem>>, vector<1x4x16xf32>
    %26 = vector.shape_cast %25 : vector<1x4x16xf32> to vector<4x16xf32>
    %cst_18 = arith.constant 1.000000e+00 : f32
    %27 = vector.broadcast %cst_18 : f32 to vector<4x16xf32>
    %28 = arith.mulf %27, %26 : vector<4x16xf32>
    %29 = arith.addf %0, %28 : vector<4x16xf32>
    %cst_19 = arith.constant 0.000000e+00 : f32
    %30 = vector.broadcast %cst_19 : f32 to vector<4x16xf32>
    %31 = arith.cmpf olt, %29, %30 : vector<4x16xf32>
    %cst_20 = arith.constant 1.000000e+00 : f32
    %cst_21 = arith.constant 0.000000e+00 : f32
    %32 = vector.broadcast %cst_20 : f32 to vector<4x16xf32>
    %33 = vector.broadcast %cst_21 : f32 to vector<4x16xf32>
    %34 = arith.select %31, %32, %33 : vector<4x16xi1>, vector<4x16xf32>
    %35 = arith.addf %24, %34 : vector<4x16xf32>
    %cst_22 = arith.constant 0.333333343 : f32
    %36 = vector.broadcast %cst_22 : f32 to vector<4x16xf32>
    %37 = arith.mulf %35, %36 : vector<4x16xf32>
    %38 = arith.subf %1, %37 : vector<4x16xf32>
    %39 = arith.mulf %38, %0 : vector<4x16xf32>
    %cst_23 = arith.constant dense<0.000000e+00> : vector<4xf32>
    %40 = vector.multi_reduction <add>, %39, %cst_23 [1] : vector<4x16xf32> to vector<4xf32>
    %41 = vector.shape_cast %40 : vector<4xf32> to vector<4x1xf32>
    %c0_24 = arith.constant 0 : index
    %c0_25 = arith.constant 0 : index
    %42 = vector.load %arg3[%c0_24, %c0_25] : memref<4x1xf32, #tpu.memory_space<vmem>>, vector<4x1xf32>
    tpu.vector_store %arg3[%c0_24, %c0_25], %41 {strides = array<i32>} : memref<4x1xf32, #tpu.memory_space<vmem>>, vector<4x1xf32>,
    return
  }
}

</mosaic_0001>

<llo_original>
// kernel: partial_resnet_pfyl_forward.7
$region0: #{partial_resnet_pfyl_forward.7}
  #allocation0 [shape = 'u32[]', space=smem, size = 0x4, offset = 0x4, fixed_abs, tag = 'smem constant byte address 0x4 - core index']
  #allocation1 [shape = 'u32[144,128]{1,0:T(1,128)}', space=vmem, size = 0x12000, scoped, tag = 'internal scratch']
  #allocation2 [shape = 'f32[256,128]{1,0:T(8,128)}', space=vmem, size = 0x20000, scoped, tag = 'scratch operand']
  %s0 = inlined_call_operand.vmem [shape: bf16[256,256], index: 0, kind: input, shape index: {}]
  %s1 = inlined_call_operand.vmem [shape: bf16[256,128], index: 1, kind: input, shape index: {}]
  %s2 = inlined_call_operand.vmem [shape: f32[1,128], index: 2, kind: input, shape index: {}]
  %s3 = inlined_call_operand.vmem [shape: f32[256,128], index: 3, kind: output, shape index: {}]
  %s4 = sld [smem:[#allocation0]]
  $region30: #{partial_resnet_pfyl_forward.7} parent=0
    _
  %s6 = ssub.s32 1, %s4
  %s7 = scalar_select 0, %s6, %s4
  // Predicated region
  $region2: #{partial_resnet_pfyl_forward.7} parent=0 // pred_check
    _
  $region3: #{partial_resnet_pfyl_forward.7} parent=0 // pred_check_branch
    %9 = sbr.rel (0) target = $region5
  $region4: #{partial_resnet_pfyl_forward.7} parent=0 // pred_region
    _
  $region5: #{partial_resnet_pfyl_forward.7} parent=0 // pred_fallthru
    _
  // Predicated region
  $region6: #{partial_resnet_pfyl_forward.7} parent=0 // pred_check
    _
  $region7: #{partial_resnet_pfyl_forward.7} parent=0 // pred_check_branch
    %11 = sbr.rel (0) target = $region9
  $region8: #{partial_resnet_pfyl_forward.7} parent=0 // pred_region
    _
  $region9: #{partial_resnet_pfyl_forward.7} parent=0 // pred_fallthru
    _
  // Predicated region
  $region10: #{partial_resnet_pfyl_forward.7} parent=0 // pred_check
    _
  $region11: #{partial_resnet_pfyl_forward.7} parent=0 // pred_check_branch
    %13 = sbr.rel (0) target = $region13
  $region12: #{partial_resnet_pfyl_forward.7} parent=0 // pred_region
    _
  $region13: #{partial_resnet_pfyl_forward.7} parent=0 // pred_fallthru
    _
  %p15 = scmp.eq.s32.totalorder 0, 0
  // Predicated region
  $region14: #{partial_resnet_pfyl_forward.7} parent=0 // pred_check
    %p16 = pneg %p15
  $region15: #{partial_resnet_pfyl_forward.7} parent=0 // pred_check_branch
    %18 = sbr.rel (%p16) target = $region17
  $region16: #{partial_resnet_pfyl_forward.7} parent=0 // pred_region
    %19 = vst [vmem:[#allocation2] sm:$0xff] 0.0
    %20 = vst [vmem:[#allocation2 + $0x8] sm:$0xff] 0.0
    %21 = vst [vmem:[#allocation2 + $0x10] sm:$0xff] 0.0
    %22 = vst [vmem:[#allocation2 + $0x18] sm:$0xff] 0.0
    %23 = vst [vmem:[#allocation2 + $0x20] sm:$0xff] 0.0
    %24 = vst [vmem:[#allocation2 + $0x28] sm:$0xff] 0.0
    %25 = vst [vmem:[#allocation2 + $0x30] sm:$0xff] 0.0
    %26 = vst [vmem:[#allocation2 + $0x38] sm:$0xff] 0.0
    %27 = vst [vmem:[#allocation2 + $0x40] sm:$0xff] 0.0
    %28 = vst [vmem:[#allocation2 + $0x48] sm:$0xff] 0.0
    %29 = vst [vmem:[#allocation2 + $0x50] sm:$0xff] 0.0
    %30 = vst [vmem:[#allocation2 + $0x58] sm:$0xff] 0.0
    %31 = vst [vmem:[#allocation2 + $0x60] sm:$0xff] 0.0
    %32 = vst [vmem:[#allocation2 + $0x68] sm:$0xff] 0.0
    %33 = vst [vmem:[#allocation2 + $0x70] sm:$0xff] 0.0
    %34 = vst [vmem:[#allocation2 + $0x78] sm:$0xff] 0.0
    %35 = vst [vmem:[#allocation2 + $0x80] sm:$0xff] 0.0
    %36 = vst [vmem:[#allocation2 + $0x88] sm:$0xff] 0.0
    %37 = vst [vmem:[#allocation2 + $0x90] sm:$0xff] 0.0
    %38 = vst [vmem:[#allocation2 + $0x98] sm:$0xff] 0.0
    %39 = vst [vmem:[#allocation2 + $0xa0] sm:$0xff] 0.0
    %40 = vst [vmem:[#allocation2 + $0xa8] sm:$0xff] 0.0
    %41 = vst [vmem:[#allocation2 + $0xb0] sm:$0xff] 0.0
    %42 = vst [vmem:[#allocation2 + $0xb8] sm:$0xff] 0.0
    %43 = vst [vmem:[#allocation2 + $0xc0] sm:$0xff] 0.0
    %44 = vst [vmem:[#allocation2 + $0xc8] sm:$0xff] 0.0
    %45 = vst [vmem:[#allocation2 + $0xd0] sm:$0xff] 0.0
    %46 = vst [vmem:[#allocation2 + $0xd8] sm:$0xff] 0.0
    %47 = vst [vmem:[#allocation2 + $0xe0] sm:$0xff] 0.0
    %48 = vst [vmem:[#allocation2 + $0xe8] sm:$0xff] 0.0
    %49 = vst [vmem:[#allocation2 + $0xf0] sm:$0xff] 0.0
    %50 = vst [vmem:[#allocation2 + $0xf8] sm:$0xff] 0.0
  $region17: #{partial_resnet_pfyl_forward.7} parent=0 // pred_fallthru
    _
  %v51 = vld [vmem:[#allocation2] sm:$0xff]
  %v52 = vld [vmem:[#allocation2 + $0x8] sm:$0xff]
  %v53 = vld [vmem:[#allocation2 + $0x10] sm:$0xff]
  %v54 = vld [vmem:[#allocation2 + $0x18] sm:$0xff]
  %v55 = vld [vmem:[#allocation2 + $0x20] sm:$0xff]
  %v56 = vld [vmem:[#allocation2 + $0x28] sm:$0xff]
  %v57 = vld [vmem:[#allocation2 + $0x30] sm:$0xff]
  %v58 = vld [vmem:[#allocation2 + $0x38] sm:$0xff]
  %v59 = vld [vmem:[#allocation2 + $0x40] sm:$0xff]
  %v60 = vld [vmem:[#allocation2 + $0x48] sm:$0xff]
  %v61 = vld [vmem:[#allocation2 + $0x50] sm:$0xff]
  %v62 = vld [vmem:[#allocation2 + $0x58] sm:$0xff]
  %v63 = vld [vmem:[#allocation2 + $0x60] sm:$0xff]
  %v64 = vld [vmem:[#allocation2 + $0x68] sm:$0xff]
  %v65 = vld [vmem:[#allocation2 + $0x70] sm:$0xff]
  %v66 = vld [vmem:[#allocation2 + $0x78] sm:$0xff]
  %v67 = vld [vmem:[#allocation2 + $0x80] sm:$0xff]
  %v68 = vld [vmem:[#allocation2 + $0x88] sm:$0xff]
  %v69 = vld [vmem:[#allocation2 + $0x90] sm:$0xff]
  %v70 = vld [vmem:[#allocation2 + $0x98] sm:$0xff]
  %v71 = vld [vmem:[#allocation2 + $0xa0] sm:$0xff]
  %v72 = vld [vmem:[#allocation2 + $0xa8] sm:$0xff]
  %v73 = vld [vmem:[#allocation2 + $0xb0] sm:$0xff]
  %v74 = vld [vmem:[#allocation2 + $0xb8] sm:$0xff]
  %v75 = vld [vmem:[#allocation2 + $0xc0] sm:$0xff]
  %v76 = vld [vmem:[#allocation2 + $0xc8] sm:$0xff]
  %v77 = vld [vmem:[#allocation2 + $0xd0] sm:$0xff]
  %v78 = vld [vmem:[#allocation2 + $0xd8] sm:$0xff]
  %v79 = vld [vmem:[#allocation2 + $0xe0] sm:$0xff]
  %v80 = vld [vmem:[#allocation2 + $0xe8] sm:$0xff]
  %v81 = vld [vmem:[#allocation2 + $0xf0] sm:$0xff]
  %v82 = vld [vmem:[#allocation2 + $0xf8] sm:$0xff]
  %v83 = vld [vmem:[%s0] sm:$0xff]
  %v84 = vld [vmem:[%s0 + $0x8] sm:$0xff]
  %v85 = vld [vmem:[%s0 + $0x10] sm:$0xff]
  %v86 = vld [vmem:[%s0 + $0x18] sm:$0xff]
  %v87 = vld [vmem:[%s0 + $0x20] sm:$0xff]
  %v88 = vld [vmem:[%s0 + $0x28] sm:$0xff]
  %v89 = vld [vmem:[%s0 + $0x30] sm:$0xff]
  %v90 = vld [vmem:[%s0 + $0x38] sm:$0xff]
  %v91 = vld [vmem:[%s0 + $0x40] sm:$0xff]
  %v92 = vld [vmem:[%s0 + $0x48] sm:$0xff]
  %v93 = vld [vmem:[%s0 + $0x50] sm:$0xff]
  %v94 = vld [vmem:[%s0 + $0x58] sm:$0xff]
  %v95 = vld [vmem:[%s0 + $0x60] sm:$0xff]
  %v96 = vld [vmem:[%s0 + $0x68] sm:$0xff]
  %v97 = vld [vmem:[%s0 + $0x70] sm:$0xff]
  %v98 = vld [vmem:[%s0 + $0x78] sm:$0xff]
  %v99 = vld [vmem:[%s0 + $0x80] sm:$0xff]
  %v100 = vld [vmem:[%s0 + $0x88] sm:$0xff]
  %v101 = vld [vmem:[%s0 + $0x90] sm:$0xff]
  %v102 = vld [vmem:[%s0 + $0x98] sm:$0xff]
  %v103 = vld [vmem:[%s0 + $0xa0] sm:$0xff]
  %v104 = vld [vmem:[%s0 + $0xa8] sm:$0xff]
  %v105 = vld [vmem:[%s0 + $0xb0] sm:$0xff]
  %v106 = vld [vmem:[%s0 + $0xb8] sm:$0xff]
  %v107 = vld [vmem:[%s0 + $0xc0] sm:$0xff]
  %v108 = vld [vmem:[%s0 + $0xc8] sm:$0xff]
  %v109 = vld [vmem:[%s0 + $0xd0] sm:$0xff]
  %v110 = vld [vmem:[%s0 + $0xd8] sm:$0xff]
  %v111 = vld [vmem:[%s0 + $0xe0] sm:$0xff]
  %v112 = vld [vmem:[%s0 + $0xe8] sm:$0xff]
  %v113 = vld [vmem:[%s0 + $0xf0] sm:$0xff]
  %v114 = vld [vmem:[%s0 + $0xf8] sm:$0xff]
  %v115 = vld [vmem:[%s1] sm:$0xf]
  %v116 = vld [vmem:[%s1 + $0x4] sm:$0xf]
  %v117 = vld [vmem:[%s1 + $0x8] sm:$0xf]
  %v118 = vld [vmem:[%s1 + $0xc] sm:$0xf]
  %v119 = vld [vmem:[%s1 + $0x10] sm:$0xf]
  %v120 = vld [vmem:[%s1 + $0x14] sm:$0xf]
  %v121 = vld [vmem:[%s1 + $0x18] sm:$0xf]
  %v122 = vld [vmem:[%s1 + $0x1c] sm:$0xf]
  %v123 = vld [vmem:[%s1 + $0x20] sm:$0xf]
  %v124 = vld [vmem:[%s1 + $0x24] sm:$0xf]
  %v125 = vld [vmem:[%s1 + $0x28] sm:$0xf]
  %v126 = vld [vmem:[%s1 + $0x2c] sm:$0xf]
  %v127 = vld [vmem:[%s1 + $0x30] sm:$0xf]
  %v128 = vld [vmem:[%s1 + $0x34] sm:$0xf]
  %v129 = vld [vmem:[%s1 + $0x38] sm:$0xf]
  %v130 = vld [vmem:[%s1 + $0x3c] sm:$0xf]
  %v131 = vld [vmem:[%s1 + $0x40] sm:$0xf]
  %v132 = vld [vmem:[%s1 + $0x44] sm:$0xf]
  %v133 = vld [vmem:[%s1 + $0x48] sm:$0xf]
  %v134 = vld [vmem:[%s1 + $0x4c] sm:$0xf]
  %v135 = vld [vmem:[%s1 + $0x50] sm:$0xf]
  %v136 = vld [vmem:[%s1 + $0x54] sm:$0xf]
  %v137 = vld [vmem:[%s1 + $0x58] sm:$0xf]
  %v138 = vld [vmem:[%s1 + $0x5c] sm:$0xf]
  %v139 = vld [vmem:[%s1 + $0x60] sm:$0xf]
  %v140 = vld [vmem:[%s1 + $0x64] sm:$0xf]
  %v141 = vld [vmem:[%s1 + $0x68] sm:$0xf]
  %v142 = vld [vmem:[%s1 + $0x6c] sm:$0xf]
  %v143 = vld [vmem:[%s1 + $0x70] sm:$0xf]
  %v144 = vld [vmem:[%s1 + $0x74] sm:$0xf]
  %v145 = vld [vmem:[%s1 + $0x78] sm:$0xf]
  %v146 = vld [vmem:[%s1 + $0x7c] sm:$0xf]
  %v179 = vunpack.c.l.b16 %v83
  %v180 = vunpack.c.h.b16 %v83
  %v181 = vunpack.c.l.b16 %v84
  %v182 = vunpack.c.h.b16 %v84
  %v183 = vunpack.c.l.b16 %v85
  %v184 = vunpack.c.h.b16 %v85
  %v185 = vunpack.c.l.b16 %v86
  %v186 = vunpack.c.h.b16 %v86
  %v187 = vunpack.c.l.b16 %v87
  %v188 = vunpack.c.h.b16 %v87
  %v189 = vunpack.c.l.b16 %v88
  %v190 = vunpack.c.h.b16 %v88
  %v191 = vunpack.c.l.b16 %v89
  %v192 = vunpack.c.h.b16 %v89
  %v193 = vunpack.c.l.b16 %v90
  %v194 = vunpack.c.h.b16 %v90
  %v195 = vunpack.c.l.b16 %v91
  %v196 = vunpack.c.h.b16 %v91
  %v197 = vunpack.c.l.b16 %v92
  %v198 = vunpack.c.h.b16 %v92
  %v199 = vunpack.c.l.b16 %v93
  %v200 = vunpack.c.h.b16 %v93
  %v201 = vunpack.c.l.b16 %v94
  %v202 = vunpack.c.h.b16 %v94
  %v203 = vunpack.c.l.b16 %v95
  %v204 = vunpack.c.h.b16 %v95
  %v205 = vunpack.c.l.b16 %v96
  %v206 = vunpack.c.h.b16 %v96
  %v207 = vunpack.c.l.b16 %v97
  %v208 = vunpack.c.h.b16 %v97
  %v209 = vunpack.c.l.b16 %v98
  %v210 = vunpack.c.h.b16 %v98
  %v211 = vunpack.c.l.b16 %v99
  %v212 = vunpack.c.h.b16 %v99
  %v213 = vunpack.c.l.b16 %v100
  %v214 = vunpack.c.h.b16 %v100
  %v215 = vunpack.c.l.b16 %v101
  %v216 = vunpack.c.h.b16 %v101
  %v217 = vunpack.c.l.b16 %v102
  %v218 = vunpack.c.h.b16 %v102
  %v219 = vunpack.c.l.b16 %v103
  %v220 = vunpack.c.h.b16 %v103
  %v221 = vunpack.c.l.b16 %v104
  %v222 = vunpack.c.h.b16 %v104
  %v223 = vunpack.c.l.b16 %v105
  %v224 = vunpack.c.h.b16 %v105
  %v225 = vunpack.c.l.b16 %v106
  %v226 = vunpack.c.h.b16 %v106
  %v227 = vunpack.c.l.b16 %v107
  %v228 = vunpack.c.h.b16 %v107
  %v229 = vunpack.c.l.b16 %v108
  %v230 = vunpack.c.h.b16 %v108
  %v231 = vunpack.c.l.b16 %v109
  %v232 = vunpack.c.h.b16 %v109
  %v233 = vunpack.c.l.b16 %v110
  %v234 = vunpack.c.h.b16 %v110
  %v235 = vunpack.c.l.b16 %v111
  %v236 = vunpack.c.h.b16 %v111
  %v237 = vunpack.c.l.b16 %v112
  %v238 = vunpack.c.h.b16 %v112
  %v239 = vunpack.c.l.b16 %v113
  %v240 = vunpack.c.h.b16 %v113
  %v241 = vunpack.c.l.b16 %v114
  %v242 = vunpack.c.h.b16 %v114
  %v243 = vpack.c.b16 %v181, %v179
  %v244 = vpack.c.b16 %v182, %v180
  %v245 = vpack.c.b16 %v185, %v183
  %v246 = vpack.c.b16 %v186, %v184
  %v247 = vpack.c.b16 %v189, %v187
  %v248 = vpack.c.b16 %v190, %v188
  %v249 = vpack.c.b16 %v193, %v191
  %v250 = vpack.c.b16 %v194, %v192
  %v251 = vpack.c.b16 %v197, %v195
  %v252 = vpack.c.b16 %v198, %v196
  %v253 = vpack.c.b16 %v201, %v199
  %v254 = vpack.c.b16 %v202, %v200
  %v255 = vpack.c.b16 %v205, %v203
  %v256 = vpack.c.b16 %v206, %v204
  %v257 = vpack.c.b16 %v209, %v207
  %v258 = vpack.c.b16 %v210, %v208
  %v259 = vpack.c.b16 %v213, %v211
  %v260 = vpack.c.b16 %v214, %v212
  %v261 = vpack.c.b16 %v217, %v215
  %v262 = vpack.c.b16 %v218, %v216
  %v263 = vpack.c.b16 %v221, %v219
  %v264 = vpack.c.b16 %v222, %v220
  %v265 = vpack.c.b16 %v225, %v223
  %v266 = vpack.c.b16 %v226, %v224
  %v267 = vpack.c.b16 %v229, %v227
  %v268 = vpack.c.b16 %v230, %v228
  %v269 = vpack.c.b16 %v233, %v231
  %v270 = vpack.c.b16 %v234, %v232
  %v271 = vpack.c.b16 %v237, %v235
  %v272 = vpack.c.b16 %v238, %v236
  %v273 = vpack.c.b16 %v241, %v239
  %v274 = vpack.c.b16 %v242, %v240
  %v339 = vunpack.c.l.b16 %v115
  %v340 = vunpack.c.l.b16 %v116
  %v341 = vunpack.c.l.b16 %v117
  %v342 = vunpack.c.l.b16 %v118
  %v343 = vunpack.c.l.b16 %v119
  %v344 = vunpack.c.l.b16 %v120
  %v345 = vunpack.c.l.b16 %v121
  %v346 = vunpack.c.l.b16 %v122
  %v347 = vunpack.c.l.b16 %v123
  %v348 = vunpack.c.l.b16 %v124
  %v349 = vunpack.c.l.b16 %v125
  %v350 = vunpack.c.l.b16 %v126
  %v351 = vunpack.c.l.b16 %v127
  %v352 = vunpack.c.l.b16 %v128
  %v353 = vunpack.c.l.b16 %v129
  %v354 = vunpack.c.l.b16 %v130
  %v355 = vunpack.c.l.b16 %v131
  %v356 = vunpack.c.l.b16 %v132
  %v357 = vunpack.c.l.b16 %v133
  %v358 = vunpack.c.l.b16 %v134
  %v359 = vunpack.c.l.b16 %v135
  %v360 = vunpack.c.l.b16 %v136
  %v361 = vunpack.c.l.b16 %v137
  %v362 = vunpack.c.l.b16 %v138
  %v363 = vunpack.c.l.b16 %v139
  %v364 = vunpack.c.l.b16 %v140
  %v365 = vunpack.c.l.b16 %v141
  %v366 = vunpack.c.l.b16 %v142
  %v367 = vunpack.c.l.b16 %v143
  %v368 = vunpack.c.l.b16 %v144
  %v369 = vunpack.c.l.b16 %v145
  %v370 = vunpack.c.l.b16 %v146
  %v371 = vpack.c.b16 %v340, %v339
  %v372 = vpack.c.b16 %v342, %v341
  %v373 = vpack.c.b16 %v344, %v343
  %v374 = vpack.c.b16 %v346, %v345
  %v375 = vpack.c.b16 %v348, %v347
  %v376 = vpack.c.b16 %v350, %v349
  %v377 = vpack.c.b16 %v352, %v351
  %v378 = vpack.c.b16 %v354, %v353
  %v379 = vpack.c.b16 %v356, %v355
  %v380 = vpack.c.b16 %v358, %v357
  %v381 = vpack.c.b16 %v360, %v359
  %v382 = vpack.c.b16 %v362, %v361
  %v383 = vpack.c.b16 %v364, %v363
  %v384 = vpack.c.b16 %v366, %v365
  %v385 = vpack.c.b16 %v368, %v367
  %v386 = vpack.c.b16 %v370, %v369
  %403 = vmatprep.subr.bf16.mxu0 0
  %404 = vmatpush1.bf16.msra.mxu0 %v371
  %405 = vmatprep.subr.bf16.mxu0 0
  %406 = vmatpush1.bf16.msra.mxu0 %v372
  %407 = vmatprep.subr.bf16.mxu0 0
  %408 = vmatpush1.bf16.msra.mxu0 %v373
  %409 = vmatprep.subr.bf16.mxu0 0
  %410 = vmatpush1.bf16.msra.mxu0 %v374
  %411 = vmatprep.subr.bf16.mxu0 0
  %412 = vmatpush1.bf16.msra.mxu0 %v375
  %413 = vmatprep.subr.bf16.mxu0 0
  %414 = vmatpush1.bf16.msra.mxu0 %v376
  %415 = vmatprep.subr.bf16.mxu0 0
  %416 = vmatpush1.bf16.msra.mxu0 %v377
  %417 = vmatprep.subr.bf16.mxu0 0
  %418 = vmatpush1.bf16.msra.mxu0 %v378
  %419 = vmatprep.subr.bf16.mxu0 0
  %420 = vmatpush1.bf16.msra.mxu0 %v379
  %421 = vmatprep.subr.bf16.mxu0 0
  %422 = vmatpush1.bf16.msra.mxu0 %v380
  %423 = vmatprep.subr.bf16.mxu0 0
  %424 = vmatpush1.bf16.msra.mxu0 %v381
  %425 = vmatprep.subr.bf16.mxu0 0
  %426 = vmatpush1.bf16.msra.mxu0 %v382
  %427 = vmatprep.subr.bf16.mxu0 0
  %428 = vmatpush1.bf16.msra.mxu0 %v383
  %429 = vmatprep.subr.bf16.mxu0 0
  %430 = vmatpush1.bf16.msra.mxu0 %v384
  %431 = vmatprep.subr.bf16.mxu0 0
  %432 = vmatpush1.bf16.msra.mxu0 %v385
  %433 = vmatprep.subr.bf16.mxu0 0
  %434 = vmatpush1.bf16.msra.mxu0 %v386
  %435 = vmatprep.mubr.bf16.mxu0 %v244
  %436 = vmatmul.mubr.bf16.gmra.mrb[0].mxu0 %v243
  %v437 = vpop.f32.mrb[0].mxu0
  %v438 = vadd.f32 0.0, %v437
  %v439 = vpop.f32.mrb[0].mxu0
  %v440 = vpop.f32.mrb[0].mxu0
  %v441 = vadd.f32 0.0, %v440
  %v442 = vpop.f32.mrb[0].mxu0
  %443 = vmatprep.mubr.bf16.mxu0 %v246
  %444 = vmatmul.mubr.bf16.gmra.mrb[0].mxu0 %v245
  %v445 = vpop.f32.mrb[0].mxu0
  %v446 = vadd.f32 0.0, %v445
  %v447 = vpop.f32.mrb[0].mxu0
  %v448 = vpop.f32.mrb[0].mxu0
  %v449 = vadd.f32 0.0, %v448
  %v450 = vpop.f32.mrb[0].mxu0
  %451 = vmatprep.mubr.bf16.mxu0 %v248
  %452 = vmatmul.mubr.bf16.gmra.mrb[0].mxu0 %v247
  %v453 = vpop.f32.mrb[0].mxu0
  %v454 = vadd.f32 0.0, %v453
  %v455 = vpop.f32.mrb[0].mxu0
  %v456 = vpop.f32.mrb[0].mxu0
  %v457 = vadd.f32 0.0, %v456
  %v458 = vpop.f32.mrb[0].mxu0
  %459 = vmatprep.mubr.bf16.mxu0 %v250
  %460 = vmatmul.mubr.bf16.gmra.mrb[0].mxu0 %v249
  %v461 = vpop.f32.mrb[0].mxu0
  %v462 = vadd.f32 0.0, %v461
  %v463 = vpop.f32.mrb[0].mxu0
  %v464 = vpop.f32.mrb[0].mxu0
  %v465 = vadd.f32 0.0, %v464
  %v466 = vpop.f32.mrb[0].mxu0
  %467 = vmatprep.mubr.bf16.mxu0 %v252
  %468 = vmatmul.mubr.bf16.gmra.mrb[0].mxu0 %v251
  %v469 = vpop.f32.mrb[0].mxu0
  %v470 = vadd.f32 0.0, %v469
  %v471 = vpop.f32.mrb[0].mxu0
  %v472 = vpop.f32.mrb[0].mxu0
  %v473 = vadd.f32 0.0, %v472
  %v474 = vpop.f32.mrb[0].mxu0
  %475 = vmatprep.mubr.bf16.mxu0 %v254
  %476 = vmatmul.mubr.bf16.gmra.mrb[0].mxu0 %v253
  %v477 = vpop.f32.mrb[0].mxu0
  %v478 = vadd.f32 0.0, %v477
  %v479 = vpop.f32.mrb[0].mxu0
  %v480 = vpop.f32.mrb[0].mxu0
  %v481 = vadd.f32 0.0, %v480
  %v482 = vpop.f32.mrb[0].mxu0
  %483 = vmatprep.mubr.bf16.mxu0 %v256
  %484 = vmatmul.mubr.bf16.gmra.mrb[0].mxu0 %v255
  %v485 = vpop.f32.mrb[0].mxu0
  %v486 = vadd.f32 0.0, %v485
  %v487 = vpop.f32.mrb[0].mxu0
  %v488 = vpop.f32.mrb[0].mxu0
  %v489 = vadd.f32 0.0, %v488
  %v490 = vpop.f32.mrb[0].mxu0
  %491 = vmatprep.mubr.bf16.mxu0 %v258
  %492 = vmatmul.mubr.bf16.gmra.mrb[0].mxu0 %v257
  %v493 = vpop.f32.mrb[0].mxu0
  %v494 = vadd.f32 0.0, %v493
  %v495 = vpop.f32.mrb[0].mxu0
  %v496 = vpop.f32.mrb[0].mxu0
  %v497 = vadd.f32 0.0, %v496
  %v498 = vpop.f32.mrb[0].mxu0
  %499 = vmatprep.mubr.bf16.mxu0 %v260
  %500 = vmatmul.mubr.bf16.gmra.mrb[0].mxu0 %v259
  %v501 = vpop.f32.mrb[0].mxu0
  %v502 = vadd.f32 0.0, %v501
  %v503 = vpop.f32.mrb[0].mxu0
  %v504 = vpop.f32.mrb[0].mxu0
  %v505 = vadd.f32 0.0, %v504
  %v506 = vpop.f32.mrb[0].mxu0
  %507 = vmatprep.mubr.bf16.mxu0 %v262
  %508 = vmatmul.mubr.bf16.gmra.mrb[0].mxu0 %v261
  %v509 = vpop.f32.mrb[0].mxu0
  %v510 = vadd.f32 0.0, %v509
  %v511 = vpop.f32.mrb[0].mxu0
  %v512 = vpop.f32.mrb[0].mxu0
  %v513 = vadd.f32 0.0, %v512
  %v514 = vpop.f32.mrb[0].mxu0
  %515 = vmatprep.mubr.bf16.mxu0 %v264
  %516 = vmatmul.mubr.bf16.gmra.mrb[0].mxu0 %v263
  %v517 = vpop.f32.mrb[0].mxu0
  %v518 = vadd.f32 0.0, %v517
  %v519 = vpop.f32.mrb[0].mxu0
  %v520 = vpop.f32.mrb[0].mxu0
  %v521 = vadd.f32 0.0, %v520
  %v522 = vpop.f32.mrb[0].mxu0
  %523 = vmatprep.mubr.bf16.mxu0 %v266
  %524 = vmatmul.mubr.bf16.gmra.mrb[0].mxu0 %v265
  %v525 = vpop.f32.mrb[0].mxu0
  %v526 = vadd.f32 0.0, %v525
  %v527 = vpop.f32.mrb[0].mxu0
  %v528 = vpop.f32.mrb[0].mxu0
  %v529 = vadd.f32 0.0, %v528
  %v530 = vpop.f32.mrb[0].mxu0
  %531 = vmatprep.mubr.bf16.mxu0 %v268
  %532 = vmatmul.mubr.bf16.gmra.mrb[0].mxu0 %v267
  %v533 = vpop.f32.mrb[0].mxu0
  %v534 = vadd.f32 0.0, %v533
  %v535 = vpop.f32.mrb[0].mxu0
  %v536 = vpop.f32.mrb[0].mxu0
  %v537 = vadd.f32 0.0, %v536
  %v538 = vpop.f32.mrb[0].mxu0
  %539 = vmatprep.mubr.bf16.mxu0 %v270
  %540 = vmatmul.mubr.bf16.gmra.mrb[0].mxu0 %v269
  %v541 = vpop.f32.mrb[0].mxu0
  %v542 = vadd.f32 0.0, %v541
  %v543 = vpop.f32.mrb[0].mxu0
  %v544 = vpop.f32.mrb[0].mxu0
  %v545 = vadd.f32 0.0, %v544
  %v546 = vpop.f32.mrb[0].mxu0
  %547 = vmatprep.mubr.bf16.mxu0 %v272
  %548 = vmatmul.mubr.bf16.gmra.mrb[0].mxu0 %v271
  %v549 = vpop.f32.mrb[0].mxu0
  %v550 = vadd.f32 0.0, %v549
  %v551 = vpop.f32.mrb[0].mxu0
  %v552 = vpop.f32.mrb[0].mxu0
  %v553 = vadd.f32 0.0, %v552
  %v554 = vpop.f32.mrb[0].mxu0
  %555 = vmatprep.mubr.bf16.mxu0 %v274
  %556 = vmatmul.mubr.bf16.gmra.mrb[0].mxu0 %v273
  %v557 = vpop.f32.mrb[0].mxu0
  %v558 = vadd.f32 0.0, %v557
  %v559 = vpop.f32.mrb[0].mxu0
  %v560 = vpop.f32.mrb[0].mxu0
  %v561 = vadd.f32 0.0, %v560
  %v562 = vpop.f32.mrb[0].mxu0
  %563 = vdwg.mxu0
  %v564 = vadd.f32 %v51, %v438
  %v565 = vadd.f32 %v52, %v441
  %v566 = vadd.f32 %v53, %v446
  %v567 = vadd.f32 %v54, %v449
  %v568 = vadd.f32 %v55, %v454
  %v569 = vadd.f32 %v56, %v457
  %v570 = vadd.f32 %v57, %v462
  %v571 = vadd.f32 %v58, %v465
  %v572 = vadd.f32 %v59, %v470
  %v573 = vadd.f32 %v60, %v473
  %v574 = vadd.f32 %v61, %v478
  %v575 = vadd.f32 %v62, %v481
  %v576 = vadd.f32 %v63, %v486
  %v577 = vadd.f32 %v64, %v489
  %v578 = vadd.f32 %v65, %v494
  %v579 = vadd.f32 %v66, %v497
  %v580 = vadd.f32 %v67, %v502
  %v581 = vadd.f32 %v68, %v505
  %v582 = vadd.f32 %v69, %v510
  %v583 = vadd.f32 %v70, %v513
  %v584 = vadd.f32 %v71, %v518
  %v585 = vadd.f32 %v72, %v521
  %v586 = vadd.f32 %v73, %v526
  %v587 = vadd.f32 %v74, %v529
  %v588 = vadd.f32 %v75, %v534
  %v589 = vadd.f32 %v76, %v537
  %v590 = vadd.f32 %v77, %v542
  %v591 = vadd.f32 %v78, %v545
  %v592 = vadd.f32 %v79, %v550
  %v593 = vadd.f32 %v80, %v553
  %v594 = vadd.f32 %v81, %v558
  %v595 = vadd.f32 %v82, %v561
  %596 = vst [vmem:[#allocation2] sm:$0xff] %v564
  %597 = vst [vmem:[#allocation2 + $0x8] sm:$0xff] %v565
  %598 = vst [vmem:[#allocation2 + $0x10] sm:$0xff] %v566
  %599 = vst [vmem:[#allocation2 + $0x18] sm:$0xff] %v567
  %600 = vst [vmem:[#allocation2 + $0x20] sm:$0xff] %v568
  %601 = vst [vmem:[#allocation2 + $0x28] sm:$0xff] %v569
  %602 = vst [vmem:[#allocation2 + $0x30] sm:$0xff] %v570
  %603 = vst [vmem:[#allocation2 + $0x38] sm:$0xff] %v571
  %604 = vst [vmem:[#allocation2 + $0x40] sm:$0xff] %v572
  %605 = vst [vmem:[#allocation2 + $0x48] sm:$0xff] %v573
  %606 = vst [vmem:[#allocation2 + $0x50] sm:$0xff] %v574
  %607 = vst [vmem:[#allocation2 + $0x58] sm:$0xff] %v575
  %608 = vst [vmem:[#allocation2 + $0x60] sm:$0xff] %v576
  %609 = vst [vmem:[#allocation2 + $0x68] sm:$0xff] %v577
  %610 = vst [vmem:[#allocation2 + $0x70] sm:$0xff] %v578
  %611 = vst [vmem:[#allocation2 + $0x78] sm:$0xff] %v579
  %612 = vst [vmem:[#allocation2 + $0x80] sm:$0xff] %v580
  %613 = vst [vmem:[#allocation2 + $0x88] sm:$0xff] %v581
  %614 = vst [vmem:[#allocation2 + $0x90] sm:$0xff] %v582
  %615 = vst [vmem:[#allocation2 + $0x98] sm:$0xff] %v583
  %616 = vst [vmem:[#allocation2 + $0xa0] sm:$0xff] %v584
  %617 = vst [vmem:[#allocation2 + $0xa8] sm:$0xff] %v585
  %618 = vst [vmem:[#allocation2 + $0xb0] sm:$0xff] %v586
  %619 = vst [vmem:[#allocation2 + $0xb8] sm:$0xff] %v587
  %620 = vst [vmem:[#allocation2 + $0xc0] sm:$0xff] %v588
  %621 = vst [vmem:[#allocation2 + $0xc8] sm:$0xff] %v589
  %622 = vst [vmem:[#allocation2 + $0xd0] sm:$0xff] %v590
  %623 = vst [vmem:[#allocation2 + $0xd8] sm:$0xff] %v591
  %624 = vst [vmem:[#allocation2 + $0xe0] sm:$0xff] %v592
  %625 = vst [vmem:[#allocation2 + $0xe8] sm:$0xff] %v593
  %626 = vst [vmem:[#allocation2 + $0xf0] sm:$0xff] %v594
  %627 = vst [vmem:[#allocation2 + $0xf8] sm:$0xff] %v595
  // Predicated region
  $region18: #{partial_resnet_pfyl_forward.7} parent=0 // pred_check
    %p628 = pneg %p15
  $region19: #{partial_resnet_pfyl_forward.7} parent=0 // pred_check_branch
    %630 = sbr.rel (%p628) target = $region21
  $region20: #{partial_resnet_pfyl_forward.7} parent=0 // pred_region
    %v631 = vld [vmem:[#allocation2] sm:$0xff]
    %v632 = vld [vmem:[#allocation2 + $0x8] sm:$0xff]
    %v633 = vld [vmem:[#allocation2 + $0x10] sm:$0xff]
    %v634 = vld [vmem:[#allocation2 + $0x18] sm:$0xff]
    %v635 = vld [vmem:[#allocation2 + $0x20] sm:$0xff]
    %v636 = vld [vmem:[#allocation2 + $0x28] sm:$0xff]
    %v637 = vld [vmem:[#allocation2 + $0x30] sm:$0xff]
    %v638 = vld [vmem:[#allocation2 + $0x38] sm:$0xff]
    %v639 = vld [vmem:[#allocation2 + $0x40] sm:$0xff]
    %v640 = vld [vmem:[#allocation2 + $0x48] sm:$0xff]
    %v641 = vld [vmem:[#allocation2 + $0x50] sm:$0xff]
    %v642 = vld [vmem:[#allocation2 + $0x58] sm:$0xff]
    %v643 = vld [vmem:[#allocation2 + $0x60] sm:$0xff]
    %v644 = vld [vmem:[#allocation2 + $0x68] sm:$0xff]
    %v645 = vld [vmem:[#allocation2 + $0x70] sm:$0xff]
    %v646 = vld [vmem:[#allocation2 + $0x78] sm:$0xff]
    %v647 = vld [vmem:[#allocation2 + $0x80] sm:$0xff]
    %v648 = vld [vmem:[#allocation2 + $0x88] sm:$0xff]
    %v649 = vld [vmem:[#allocation2 + $0x90] sm:$0xff]
    %v650 = vld [vmem:[#allocation2 + $0x98] sm:$0xff]
    %v651 = vld [vmem:[#allocation2 + $0xa0] sm:$0xff]
    %v652 = vld [vmem:[#allocation2 + $0xa8] sm:$0xff]
    %v653 = vld [vmem:[#allocation2 + $0xb0] sm:$0xff]
    %v654 = vld [vmem:[#allocation2 + $0xb8] sm:$0xff]
    %v655 = vld [vmem:[#allocation2 + $0xc0] sm:$0xff]
    %v656 = vld [vmem:[#allocation2 + $0xc8] sm:$0xff]
    %v657 = vld [vmem:[#allocation2 + $0xd0] sm:$0xff]
    %v658 = vld [vmem:[#allocation2 + $0xd8] sm:$0xff]
    %v659 = vld [vmem:[#allocation2 + $0xe0] sm:$0xff]
    %v660 = vld [vmem:[#allocation2 + $0xe8] sm:$0xff]
    %v661 = vld [vmem:[#allocation2 + $0xf0] sm:$0xff]
    %v662 = vld [vmem:[#allocation2 + $0xf8] sm:$0xff]
    %v663 = vld [vmem:[%s2] sm:$0x1]
    %v665 = vlaneseq
    %v666 = vshrl.u32 %v665, 7
    %v667 = vsub.s32 0, %v666
    %v668 = vrot.slane %v663, %v667
    %v670 = vadd.f32 %v631, %v668
    %v671 = vadd.f32 %v632, %v668
    %v672 = vadd.f32 %v633, %v668
    %v673 = vadd.f32 %v634, %v668
    %v674 = vadd.f32 %v635, %v668
    %v675 = vadd.f32 %v636, %v668
    %v676 = vadd.f32 %v637, %v668
    %v677 = vadd.f32 %v638, %v668
    %v678 = vadd.f32 %v639, %v668
    %v679 = vadd.f32 %v640, %v668
    %v680 = vadd.f32 %v641, %v668
    %v681 = vadd.f32 %v642, %v668
    %v682 = vadd.f32 %v643, %v668
    %v683 = vadd.f32 %v644, %v668
    %v684 = vadd.f32 %v645, %v668
    %v685 = vadd.f32 %v646, %v668
    %v686 = vadd.f32 %v647, %v668
    %v687 = vadd.f32 %v648, %v668
    %v688 = vadd.f32 %v649, %v668
    %v689 = vadd.f32 %v650, %v668
    %v690 = vadd.f32 %v651, %v668
    %v691 = vadd.f32 %v652, %v668
    %v692 = vadd.f32 %v653, %v668
    %v693 = vadd.f32 %v654, %v668
    %v694 = vadd.f32 %v655, %v668
    %v695 = vadd.f32 %v656, %v668
    %v696 = vadd.f32 %v657, %v668
    %v697 = vadd.f32 %v658, %v668
    %v698 = vadd.f32 %v659, %v668
    %v699 = vadd.f32 %v660, %v668
    %v700 = vadd.f32 %v661, %v668
    %v701 = vadd.f32 %v662, %v668
    %v702 = vmax.f32 %v670, 0.0
    %v703 = vmax.f32 %v671, 0.0
    %v704 = vmax.f32 %v672, 0.0
    %v705 = vmax.f32 %v673, 0.0
    %v706 = vmax.f32 %v674, 0.0
    %v707 = vmax.f32 %v675, 0.0
    %v708 = vmax.f32 %v676, 0.0
    %v709 = vmax.f32 %v677, 0.0
    %v710 = vmax.f32 %v678, 0.0
    %v711 = vmax.f32 %v679, 0.0
    %v712 = vmax.f32 %v680, 0.0
    %v713 = vmax.f32 %v681, 0.0
    %v714 = vmax.f32 %v682, 0.0
    %v715 = vmax.f32 %v683, 0.0
    %v716 = vmax.f32 %v684, 0.0
    %v717 = vmax.f32 %v685, 0.0
    %v718 = vmax.f32 %v686, 0.0
    %v719 = vmax.f32 %v687, 0.0
    %v720 = vmax.f32 %v688, 0.0
    %v721 = vmax.f32 %v689, 0.0
    %v722 = vmax.f32 %v690, 0.0
    %v723 = vmax.f32 %v691, 0.0
    %v724 = vmax.f32 %v692, 0.0
    %v725 = vmax.f32 %v693, 0.0
    %v726 = vmax.f32 %v694, 0.0
    %v727 = vmax.f32 %v695, 0.0
    %v728 = vmax.f32 %v696, 0.0
    %v729 = vmax.f32 %v697, 0.0
    %v730 = vmax.f32 %v698, 0.0
    %v731 = vmax.f32 %v699, 0.0
    %v732 = vmax.f32 %v700, 0.0
    %v733 = vmax.f32 %v701, 0.0
    %734 = vst [vmem:[%s3] sm:$0xff] %v702
    %735 = vst [vmem:[%s3 + $0x8] sm:$0xff] %v703
    %736 = vst [vmem:[%s3 + $0x10] sm:$0xff] %v704
    %737 = vst [vmem:[%s3 + $0x18] sm:$0xff] %v705
    %738 = vst [vmem:[%s3 + $0x20] sm:$0xff] %v706
    %739 = vst [vmem:[%s3 + $0x28] sm:$0xff] %v707
    %740 = vst [vmem:[%s3 + $0x30] sm:$0xff] %v708
    %741 = vst [vmem:[%s3 + $0x38] sm:$0xff] %v709
    %742 = vst [vmem:[%s3 + $0x40] sm:$0xff] %v710
    %743 = vst [vmem:[%s3 + $0x48] sm:$0xff] %v711
    %744 = vst [vmem:[%s3 + $0x50] sm:$0xff] %v712
    %745 = vst [vmem:[%s3 + $0x58] sm:$0xff] %v713
    %746 = vst [vmem:[%s3 + $0x60] sm:$0xff] %v714
    %747 = vst [vmem:[%s3 + $0x68] sm:$0xff] %v715
    %748 = vst [vmem:[%s3 + $0x70] sm:$0xff] %v716
    %749 = vst [vmem:[%s3 + $0x78] sm:$0xff] %v717
    %750 = vst [vmem:[%s3 + $0x80] sm:$0xff] %v718
    %751 = vst [vmem:[%s3 + $0x88] sm:$0xff] %v719
    %752 = vst [vmem:[%s3 + $0x90] sm:$0xff] %v720
    %753 = vst [vmem:[%s3 + $0x98] sm:$0xff] %v721
    %754 = vst [vmem:[%s3 + $0xa0] sm:$0xff] %v722
    %755 = vst [vmem:[%s3 + $0xa8] sm:$0xff] %v723
    %756 = vst [vmem:[%s3 + $0xb0] sm:$0xff] %v724
    %757 = vst [vmem:[%s3 + $0xb8] sm:$0xff] %v725
    %758 = vst [vmem:[%s3 + $0xc0] sm:$0xff] %v726
    %759 = vst [vmem:[%s3 + $0xc8] sm:$0xff] %v727
    %760 = vst [vmem:[%s3 + $0xd0] sm:$0xff] %v728
    %761 = vst [vmem:[%s3 + $0xd8] sm:$0xff] %v729
    %762 = vst [vmem:[%s3 + $0xe0] sm:$0xff] %v730
    %763 = vst [vmem:[%s3 + $0xe8] sm:$0xff] %v731
    %764 = vst [vmem:[%s3 + $0xf0] sm:$0xff] %v732
    %765 = vst [vmem:[%s3 + $0xf8] sm:$0xff] %v733
  $region21: #{partial_resnet_pfyl_forward.7} parent=0 // pred_fallthru
    _
  // Predicated region
  $region22: #{partial_resnet_pfyl_forward.7} parent=0 // pred_check
    _
  $region23: #{partial_resnet_pfyl_forward.7} parent=0 // pred_check_branch
    %767 = sbr.rel (0) target = $region25
  $region24: #{partial_resnet_pfyl_forward.7} parent=0 // pred_region
    _
  $region25: #{partial_resnet_pfyl_forward.7} parent=0 // pred_fallthru
    _
  // Predicated region
  $region26: #{partial_resnet_pfyl_forward.7} parent=0 // pred_check
    _
  $region27: #{partial_resnet_pfyl_forward.7} parent=0 // pred_check_branch
    %769 = sbr.rel (0) target = $region29
  $region28: #{partial_resnet_pfyl_forward.7} parent=0 // pred_region
    _
  $region29: #{partial_resnet_pfyl_forward.7} parent=0 // pred_fallthru
    _

// kernel: partial_resnet_pfyl_forward.8
$region0: #{partial_resnet_pfyl_forward.8}
  #allocation0 [shape = 'u32[]', space=smem, size = 0x4, offset = 0x4, fixed_abs, tag = 'smem constant byte address 0x4 - core index']
  #allocation1 [shape = 'u32[144,128]{1,0:T(1,128)}', space=vmem, size = 0x12000, scoped, tag = 'internal scratch']
  #allocation2 [shape = 'f32[64,128]{1,0:T(8,128)}', space=vmem, size = 0x8000, scoped, tag = 'scratch operand']
  %s0 = inlined_call_operand.vmem [shape: bf16[64,640], index: 0, kind: input, shape index: {}]
  %s1 = inlined_call_operand.vmem [shape: bf16[640,128], index: 1, kind: input, shape index: {}]
  %s2 = inlined_call_operand.vmem [shape: f32[1,128], index: 2, kind: input, shape index: {}]
  %s3 = inlined_call_operand.vmem [shape: f32[64,128], index: 3, kind: output, shape index: {}]
  %s4 = sld [smem:[#allocation0]]
  $region30: #{partial_resnet_pfyl_forward.8} parent=0
    _
  %s6 = ssub.s32 1, %s4
  %s7 = scalar_select 0, %s6, %s4
  // Predicated region
  $region2: #{partial_resnet_pfyl_forward.8} parent=0 // pred_check
    _
  $region3: #{partial_resnet_pfyl_forward.8} parent=0 // pred_check_branch
    %9 = sbr.rel (0) target = $region5
  $region4: #{partial_resnet_pfyl_forward.8} parent=0 // pred_region
    _
  $region5: #{partial_resnet_pfyl_forward.8} parent=0 // pred_fallthru
    _
  // Predicated region
  $region6: #{partial_resnet_pfyl_forward.8} parent=0 // pred_check
    _
  $region7: #{partial_resnet_pfyl_forward.8} parent=0 // pred_check_branch
    %11 = sbr.rel (0) target = $region9
  $region8: #{partial_resnet_pfyl_forward.8} parent=0 // pred_region
    _
  $region9: #{partial_resnet_pfyl_forward.8} parent=0 // pred_fallthru
    _
  // Predicated region
  $region10: #{partial_resnet_pfyl_forward.8} parent=0 // pred_check
    _
  $region11: #{partial_resnet_pfyl_forward.8} parent=0 // pred_check_branch
    %13 = sbr.rel (0) target = $region13
  $region12: #{partial_resnet_pfyl_forward.8} parent=0 // pred_region
    _
  $region13: #{partial_resnet_pfyl_forward.8} parent=0 // pred_fallthru
    _
  %p15 = scmp.eq.s32.totalorder 0, 0
  // Predicated region
  $region14: #{partial_resnet_pfyl_forward.8} parent=0 // pred_check
    %p16 = pneg %p15
  $region15: #{partial_resnet_pfyl_forward.8} parent=0 // pred_check_branch
    %18 = sbr.rel (%p16) target = $region17
  $region16: #{partial_resnet_pfyl_forward.8} parent=0 // pred_region
    %19 = vst [vmem:[#allocation2] sm:$0xff] 0.0
    %20 = vst [vmem:[#allocation2 + $0x8] sm:$0xff] 0.0
    %21 = vst [vmem:[#allocation2 + $0x10] sm:$0xff] 0.0
    %22 = vst [vmem:[#allocation2 + $0x18] sm:$0xff] 0.0
    %23 = vst [vmem:[#allocation2 + $0x20] sm:$0xff] 0.0
    %24 = vst [vmem:[#allocation2 + $0x28] sm:$0xff] 0.0
    %25 = vst [vmem:[#allocation2 + $0x30] sm:$0xff] 0.0
    %26 = vst [vmem:[#allocation2 + $0x38] sm:$0xff] 0.0
  $region17: #{partial_resnet_pfyl_forward.8} parent=0 // pred_fallthru
    _
  %v27 = vld [vmem:[#allocation2] sm:$0xff]
  %v28 = vld [vmem:[#allocation2 + $0x8] sm:$0xff]
  %v29 = vld [vmem:[#allocation2 + $0x10] sm:$0xff]
  %v30 = vld [vmem:[#allocation2 + $0x18] sm:$0xff]
  %v31 = vld [vmem:[#allocation2 + $0x20] sm:$0xff]
  %v32 = vld [vmem:[#allocation2 + $0x28] sm:$0xff]
  %v33 = vld [vmem:[#allocation2 + $0x30] sm:$0xff]
  %v34 = vld [vmem:[#allocation2 + $0x38] sm:$0xff]
  %v35 = vld [vmem:[%s0] sm:$0xff]
  %v36 = vld [vmem:[%s0 + $0x8] sm:$0xff]
  %v37 = vld [vmem:[%s0 + $0x10] sm:$0xf]
  %v38 = vld [vmem:[%s0 + $0x14] sm:$0xff]
  %v39 = vld [vmem:[%s0 + $0x1c] sm:$0xff]
  %v40 = vld [vmem:[%s0 + $0x24] sm:$0xf]
  %v41 = vld [vmem:[%s0 + $0x28] sm:$0xff]
  %v42 = vld [vmem:[%s0 + $0x30] sm:$0xff]
  %v43 = vld [vmem:[%s0 + $0x38] sm:$0xf]
  %v44 = vld [vmem:[%s0 + $0x3c] sm:$0xff]
  %v45 = vld [vmem:[%s0 + $0x44] sm:$0xff]
  %v46 = vld [vmem:[%s0 + $0x4c] sm:$0xf]
  %v47 = vld [vmem:[%s0 + $0x50] sm:$0xff]
  %v48 = vld [vmem:[%s0 + $0x58] sm:$0xff]
  %v49 = vld [vmem:[%s0 + $0x60] sm:$0xf]
  %v50 = vld [vmem:[%s0 + $0x64] sm:$0xff]
  %v51 = vld [vmem:[%s0 + $0x6c] sm:$0xff]
  %v52 = vld [vmem:[%s0 + $0x74] sm:$0xf]
  %v53 = vld [vmem:[%s0 + $0x78] sm:$0xff]
  %v54 = vld [vmem:[%s0 + $0x80] sm:$0xff]
  %v55 = vld [vmem:[%s0 + $0x88] sm:$0xf]
  %v56 = vld [vmem:[%s0 + $0x8c] sm:$0xff]
  %v57 = vld [vmem:[%s0 + $0x94] sm:$0xff]
  %v58 = vld [vmem:[%s0 + $0x9c] sm:$0xf]
  %v59 = vld [vmem:[%s1] sm:$0xf]
  %v60 = vld [vmem:[%s1 + $0x4] sm:$0xf]
  %v61 = vld [vmem:[%s1 + $0x8] sm:$0xf]
  %v62 = vld [vmem:[%s1 + $0xc] sm:$0xf]
  %v63 = vld [vmem:[%s1 + $0x10] sm:$0xf]
  %v64 = vld [vmem:[%s1 + $0x14] sm:$0xf]
  %v65 = vld [vmem:[%s1 + $0x18] sm:$0xf]
  %v66 = vld [vmem:[%s1 + $0x1c] sm:$0xf]
  %v67 = vld [vmem:[%s1 + $0x20] sm:$0xf]
  %v68 = vld [vmem:[%s1 + $0x24] sm:$0xf]
  %v69 = vld [vmem:[%s1 + $0x28] sm:$0xf]
  %v70 = vld [vmem:[%s1 + $0x2c] sm:$0xf]
  %v71 = vld [vmem:[%s1 + $0x30] sm:$0xf]
  %v72 = vld [vmem:[%s1 + $0x34] sm:$0xf]
  %v73 = vld [vmem:[%s1 + $0x38] sm:$0xf]
  %v74 = vld [vmem:[%s1 + $0x3c] sm:$0xf]
  %v75 = vld [vmem:[%s1 + $0x40] sm:$0xf]
  %v76 = vld [vmem:[%s1 + $0x44] sm:$0xf]
  %v77 = vld [vmem:[%s1 + $0x48] sm:$0xf]
  %v78 = vld [vmem:[%s1 + $0x4c] sm:$0xf]
  %v79 = vld [vmem:[%s1 + $0x50] sm:$0xf]
  %v80 = vld [vmem:[%s1 + $0x54] sm:$0xf]
  %v81 = vld [vmem:[%s1 + $0x58] sm:$0xf]
  %v82 = vld [vmem:[%s1 + $0x5c] sm:$0xf]
  %v83 = vld [vmem:[%s1 + $0x60] sm:$0xf]
  %v84 = vld [vmem:[%s1 + $0x64] sm:$0xf]
  %v85 = vld [vmem:[%s1 + $0x68] sm:$0xf]
  %v86 = vld [vmem:[%s1 + $0x6c] sm:$0xf]
  %v87 = vld [vmem:[%s1 + $0x70] sm:$0xf]
  %v88 = vld [vmem:[%s1 + $0x74] sm:$0xf]
  %v89 = vld [vmem:[%s1 + $0x78] sm:$0xf]
  %v90 = vld [vmem:[%s1 + $0x7c] sm:$0xf]
  %v91 = vld [vmem:[%s1 + $0x80] sm:$0xf]
  %v92 = vld [vmem:[%s1 + $0x84] sm:$0xf]
  %v93 = vld [vmem:[%s1 + $0x88] sm:$0xf]
  %v94 = vld [vmem:[%s1 + $0x8c] sm:$0xf]
  %v95 = vld [vmem:[%s1 + $0x90] sm:$0xf]
  %v96 = vld [vmem:[%s1 + $0x94] sm:$0xf]
  %v97 = vld [vmem:[%s1 + $0x98] sm:$0xf]
  %v98 = vld [vmem:[%s1 + $0x9c] sm:$0xf]
  %v99 = vld [vmem:[%s1 + $0xa0] sm:$0xf]
  %v100 = vld [vmem:[%s1 + $0xa4] sm:$0xf]
  %v101 = vld [vmem:[%s1 + $0xa8] sm:$0xf]
  %v102 = vld [vmem:[%s1 + $0xac] sm:$0xf]
  %v103 = vld [vmem:[%s1 + $0xb0] sm:$0xf]
  %v104 = vld [vmem:[%s1 + $0xb4] sm:$0xf]
  %v105 = vld [vmem:[%s1 + $0xb8] sm:$0xf]
  %v106 = vld [vmem:[%s1 + $0xbc] sm:$0xf]
  %v107 = vld [vmem:[%s1 + $0xc0] sm:$0xf]
  %v108 = vld [vmem:[%s1 + $0xc4] sm:$0xf]
  %v109 = vld [vmem:[%s1 + $0xc8] sm:$0xf]
  %v110 = vld [vmem:[%s1 + $0xcc] sm:$0xf]
  %v111 = vld [vmem:[%s1 + $0xd0] sm:$0xf]
  %v112 = vld [vmem:[%s1 + $0xd4] sm:$0xf]
  %v113 = vld [vmem:[%s1 + $0xd8] sm:$0xf]
  %v114 = vld [vmem:[%s1 + $0xdc] sm:$0xf]
  %v115 = vld [vmem:[%s1 + $0xe0] sm:$0xf]
  %v116 = vld [vmem:[%s1 + $0xe4] sm:$0xf]
  %v117 = vld [vmem:[%s1 + $0xe8] sm:$0xf]
  %v118 = vld [vmem:[%s1 + $0xec] sm:$0xf]
  %v119 = vld [vmem:[%s1 + $0xf0] sm:$0xf]
  %v120 = vld [vmem:[%s1 + $0xf4] sm:$0xf]
  %v121 = vld [vmem:[%s1 + $0xf8] sm:$0xf]
  %v122 = vld [vmem:[%s1 + $0xfc] sm:$0xf]
  %v123 = vld [vmem:[%s1 + $0x100] sm:$0xf]
  %v124 = vld [vmem:[%s1 + $0x104] sm:$0xf]
  %v125 = vld [vmem:[%s1 + $0x108] sm:$0xf]
  %v126 = vld [vmem:[%s1 + $0x10c] sm:$0xf]
  %v127 = vld [vmem:[%s1 + $0x110] sm:$0xf]
  %v128 = vld [vmem:[%s1 + $0x114] sm:$0xf]
  %v129 = vld [vmem:[%s1 + $0x118] sm:$0xf]
  %v130 = vld [vmem:[%s1 + $0x11c] sm:$0xf]
  %v131 = vld [vmem:[%s1 + $0x120] sm:$0xf]
  %v132 = vld [vmem:[%s1 + $0x124] sm:$0xf]
  %v133 = vld [vmem:[%s1 + $0x128] sm:$0xf]
  %v134 = vld [vmem:[%s1 + $0x12c] sm:$0xf]
  %v135 = vld [vmem:[%s1 + $0x130] sm:$0xf]
  %v136 = vld [vmem:[%s1 + $0x134] sm:$0xf]
  %v137 = vld [vmem:[%s1 + $0x138] sm:$0xf]
  %v138 = vld [vmem:[%s1 + $0x13c] sm:$0xf]
  %v163 = vunpack.c.l.b16 %v35
  %v164 = vunpack.c.h.b16 %v35
  %v165 = vunpack.c.l.b16 %v36
  %v166 = vunpack.c.h.b16 %v36
  %v167 = vunpack.c.l.b16 %v37
  %v168 = vunpack.c.l.b16 %v38
  %v169 = vunpack.c.h.b16 %v38
  %v170 = vunpack.c.l.b16 %v39
  %v171 = vunpack.c.h.b16 %v39
  %v172 = vunpack.c.l.b16 %v40
  %v173 = vunpack.c.l.b16 %v41
  %v174 = vunpack.c.h.b16 %v41
  %v175 = vunpack.c.l.b16 %v42
  %v176 = vunpack.c.h.b16 %v42
  %v177 = vunpack.c.l.b16 %v43
  %v178 = vunpack.c.l.b16 %v44
  %v179 = vunpack.c.h.b16 %v44
  %v180 = vunpack.c.l.b16 %v45
  %v181 = vunpack.c.h.b16 %v45
  %v182 = vunpack.c.l.b16 %v46
  %v183 = vunpack.c.l.b16 %v47
  %v184 = vunpack.c.h.b16 %v47
  %v185 = vunpack.c.l.b16 %v48
  %v186 = vunpack.c.h.b16 %v48
  %v187 = vunpack.c.l.b16 %v49
  %v188 = vunpack.c.l.b16 %v50
  %v189 = vunpack.c.h.b16 %v50
  %v190 = vunpack.c.l.b16 %v51
  %v191 = vunpack.c.h.b16 %v51
  %v192 = vunpack.c.l.b16 %v52
  %v193 = vunpack.c.l.b16 %v53
  %v194 = vunpack.c.h.b16 %v53
  %v195 = vunpack.c.l.b16 %v54
  %v196 = vunpack.c.h.b16 %v54
  %v197 = vunpack.c.l.b16 %v55
  %v198 = vunpack.c.l.b16 %v56
  %v199 = vunpack.c.h.b16 %v56
  %v200 = vunpack.c.l.b16 %v57
  %v201 = vunpack.c.h.b16 %v57
  %v202 = vunpack.c.l.b16 %v58
  %v203 = vpack.c.b16 %v168, %v163
  %v204 = vpack.c.b16 %v169, %v164
  %v205 = vpack.c.b16 %v170, %v165
  %v206 = vpack.c.b16 %v171, %v166
  %v207 = vpack.c.b16 %v172, %v167
  %v208 = vpack.c.b16 %v178, %v173
  %v209 = vpack.c.b16 %v179, %v174
  %v210 = vpack.c.b16 %v180, %v175
  %v211 = vpack.c.b16 %v181, %v176
  %v212 = vpack.c.b16 %v182, %v177
  %v213 = vpack.c.b16 %v188, %v183
  %v214 = vpack.c.b16 %v189, %v184
  %v215 = vpack.c.b16 %v190, %v185
  %v216 = vpack.c.b16 %v191, %v186
  %v217 = vpack.c.b16 %v192, %v187
  %v218 = vpack.c.b16 %v198, %v193
  %v219 = vpack.c.b16 %v199, %v194
  %v220 = vpack.c.b16 %v200, %v195
  %v221 = vpack.c.b16 %v201, %v196
  %v222 = vpack.c.b16 %v202, %v197
  %v323 = vunpack.c.l.b16 %v59
  %v324 = vunpack.c.l.b16 %v60
  %v325 = vunpack.c.l.b16 %v61
  %v326 = vunpack.c.l.b16 %v62
  %v327 = vunpack.c.l.b16 %v63
  %v328 = vunpack.c.l.b16 %v64
  %v329 = vunpack.c.l.b16 %v65
  %v330 = vunpack.c.l.b16 %v66
  %v331 = vunpack.c.l.b16 %v67
  %v332 = vunpack.c.l.b16 %v68
  %v333 = vunpack.c.l.b16 %v69
  %v334 = vunpack.c.l.b16 %v70
  %v335 = vunpack.c.l.b16 %v71
  %v336 = vunpack.c.l.b16 %v72
  %v337 = vunpack.c.l.b16 %v73
  %v338 = vunpack.c.l.b16 %v74
  %v339 = vunpack.c.l.b16 %v75
  %v340 = vunpack.c.l.b16 %v76
  %v341 = vunpack.c.l.b16 %v77
  %v342 = vunpack.c.l.b16 %v78
  %v343 = vunpack.c.l.b16 %v79
  %v344 = vunpack.c.l.b16 %v80
  %v345 = vunpack.c.l.b16 %v81
  %v346 = vunpack.c.l.b16 %v82
  %v347 = vunpack.c.l.b16 %v83
  %v348 = vunpack.c.l.b16 %v84
  %v349 = vunpack.c.l.b16 %v85
  %v350 = vunpack.c.l.b16 %v86
  %v351 = vunpack.c.l.b16 %v87
  %v352 = vunpack.c.l.b16 %v88
  %v353 = vunpack.c.l.b16 %v89
  %v354 = vunpack.c.l.b16 %v90
  %v355 = vunpack.c.l.b16 %v91
  %v356 = vunpack.c.l.b16 %v92
  %v357 = vunpack.c.l.b16 %v93
  %v358 = vunpack.c.l.b16 %v94
  %v359 = vunpack.c.l.b16 %v95
  %v360 = vunpack.c.l.b16 %v96
  %v361 = vunpack.c.l.b16 %v97
  %v362 = vunpack.c.l.b16 %v98
  %v363 = vunpack.c.l.b16 %v99
  %v364 = vunpack.c.l.b16 %v100
  %v365 = vunpack.c.l.b16 %v101
  %v366 = vunpack.c.l.b16 %v102
  %v367 = vunpack.c.l.b16 %v103
  %v368 = vunpack.c.l.b16 %v104
  %v369 = vunpack.c.l.b16 %v105
  %v370 = vunpack.c.l.b16 %v106
  %v371 = vunpack.c.l.b16 %v107
  %v372 = vunpack.c.l.b16 %v108
  %v373 = vunpack.c.l.b16 %v109
  %v374 = vunpack.c.l.b16 %v110
  %v375 = vunpack.c.l.b16 %v111
  %v376 = vunpack.c.l.b16 %v112
  %v377 = vunpack.c.l.b16 %v113
  %v378 = vunpack.c.l.b16 %v114
  %v379 = vunpack.c.l.b16 %v115
  %v380 = vunpack.c.l.b16 %v116
  %v381 = vunpack.c.l.b16 %v117
  %v382 = vunpack.c.l.b16 %v118
  %v383 = vunpack.c.l.b16 %v119
  %v384 = vunpack.c.l.b16 %v120
  %v385 = vunpack.c.l.b16 %v121
  %v386 = vunpack.c.l.b16 %v122
  %v387 = vunpack.c.l.b16 %v123
  %v388 = vunpack.c.l.b16 %v124
  %v389 = vunpack.c.l.b16 %v125
  %v390 = vunpack.c.l.b16 %v126
  %v391 = vunpack.c.l.b16 %v127
  %v392 = vunpack.c.l.b16 %v128
  %v393 = vunpack.c.l.b16 %v129
  %v394 = vunpack.c.l.b16 %v130
  %v395 = vunpack.c.l.b16 %v131
  %v396 = vunpack.c.l.b16 %v132
  %v397 = vunpack.c.l.b16 %v133
  %v398 = vunpack.c.l.b16 %v134
  %v399 = vunpack.c.l.b16 %v135
  %v400 = vunpack.c.l.b16 %v136
  %v401 = vunpack.c.l.b16 %v137
  %v402 = vunpack.c.l.b16 %v138
  %v403 = vpack.c.b16 %v324, %v323
  %v404 = vpack.c.b16 %v326, %v325
  %v405 = vpack.c.b16 %v328, %v327
  %v406 = vpack.c.b16 %v330, %v329
  %v407 = vpack.c.b16 %v332, %v331
  %v408 = vpack.c.b16 %v334, %v333
  %v409 = vpack.c.b16 %v336, %v335
  %v410 = vpack.c.b16 %v338, %v337
  %v411 = vpack.c.b16 %v340, %v339
  %v412 = vpack.c.b16 %v342, %v341
  %v413 = vpack.c.b16 %v344, %v343
  %v414 = vpack.c.b16 %v346, %v345
  %v415 = vpack.c.b16 %v348, %v347
  %v416 = vpack.c.b16 %v350, %v349
  %v417 = vpack.c.b16 %v352, %v351
  %v418 = vpack.c.b16 %v354, %v353
  %v419 = vpack.c.b16 %v356, %v355
  %v420 = vpack.c.b16 %v358, %v357
  %v421 = vpack.c.b16 %v360, %v359
  %v422 = vpack.c.b16 %v362, %v361
  %v423 = vpack.c.b16 %v364, %v363
  %v424 = vpack.c.b16 %v366, %v365
  %v425 = vpack.c.b16 %v368, %v367
  %v426 = vpack.c.b16 %v370, %v369
  %v427 = vpack.c.b16 %v372, %v371
  %v428 = vpack.c.b16 %v374, %v373
  %v429 = vpack.c.b16 %v376, %v375
  %v430 = vpack.c.b16 %v378, %v377
  %v431 = vpack.c.b16 %v380, %v379
  %v432 = vpack.c.b16 %v382, %v381
  %v433 = vpack.c.b16 %v384, %v383
  %v434 = vpack.c.b16 %v386, %v385
  %v435 = vpack.c.b16 %v388, %v387
  %v436 = vpack.c.b16 %v390, %v389
  %v437 = vpack.c.b16 %v392, %v391
  %v438 = vpack.c.b16 %v394, %v393
  %v439 = vpack.c.b16 %v396, %v395
  %v440 = vpack.c.b16 %v398, %v397
  %v441 = vpack.c.b16 %v400, %v399
  %v442 = vpack.c.b16 %v402, %v401
  %483 = vmatprep.subr.bf16.mxu0 0
  %484 = vmatpush1.bf16.msra.mxu0 %v403
  %485 = vmatprep.subr.bf16.mxu0 0
  %486 = vmatpush1.bf16.msra.mxu0 %v404
  %487 = vmatprep.subr.bf16.mxu0 0
  %488 = vmatpush1.bf16.msra.mxu0 %v405
  %489 = vmatprep.subr.bf16.mxu0 0
  %490 = vmatpush1.bf16.msra.mxu0 %v406
  %491 = vmatprep.subr.bf16.mxu0 0
  %492 = vmatpush1.bf16.msra.mxu0 %v407
  %493 = vmatprep.subr.bf16.mxu0 0
  %494 = vmatpush1.bf16.msra.mxu0 %v408
  %495 = vmatprep.subr.bf16.mxu0 0
  %496 = vmatpush1.bf16.msra.mxu0 %v409
  %497 = vmatprep.subr.bf16.mxu0 0
  %498 = vmatpush1.bf16.msra.mxu0 %v410
  %499 = vmatprep.subr.bf16.mxu0 0
  %500 = vmatpush1.bf16.msra.mxu0 %v411
  %501 = vmatprep.subr.bf16.mxu0 0
  %502 = vmatpush1.bf16.msra.mxu0 %v412
  %503 = vmatprep.subr.bf16.mxu0 0
  %504 = vmatpush1.bf16.msra.mxu0 %v413
  %505 = vmatprep.subr.bf16.mxu0 0
  %506 = vmatpush1.bf16.msra.mxu0 %v414
  %507 = vmatprep.subr.bf16.mxu0 0
  %508 = vmatpush1.bf16.msra.mxu0 %v415
  %509 = vmatprep.subr.bf16.mxu0 0
  %510 = vmatpush1.bf16.msra.mxu0 %v416
  %511 = vmatprep.subr.bf16.mxu0 0
  %512 = vmatpush1.bf16.msra.mxu0 %v417
  %513 = vmatprep.subr.bf16.mxu0 0
  %514 = vmatpush1.bf16.msra.mxu0 %v418
  %515 = vmatprep.mubr.bf16.mxu0 %v204
  %516 = vmatmul.mubr.bf16.gmra.mrb[0].mxu0 %v203
  %v517 = vpop.f32.mrb[0].mxu0
  %v518 = vadd.f32 0.0, %v517
  %v519 = vpop.f32.mrb[0].mxu0
  %v520 = vpop.f32.mrb[0].mxu0
  %v521 = vadd.f32 0.0, %v520
  %v522 = vpop.f32.mrb[0].mxu0
  %523 = vmatprep.mubr.bf16.mxu0 %v209
  %524 = vmatmul.mubr.bf16.gmra.mrb[0].mxu0 %v208
  %v525 = vpop.f32.mrb[0].mxu0
  %v526 = vadd.f32 0.0, %v525
  %v527 = vpop.f32.mrb[0].mxu0
  %v528 = vpop.f32.mrb[0].mxu0
  %v529 = vadd.f32 0.0, %v528
  %v530 = vpop.f32.mrb[0].mxu0
  %531 = vmatprep.mubr.bf16.mxu0 %v214
  %532 = vmatmul.mubr.bf16.gmra.mrb[0].mxu0 %v213
  %v533 = vpop.f32.mrb[0].mxu0
  %v534 = vadd.f32 0.0, %v533
  %v535 = vpop.f32.mrb[0].mxu0
  %v536 = vpop.f32.mrb[0].mxu0
  %v537 = vadd.f32 0.0, %v536
  %v538 = vpop.f32.mrb[0].mxu0
  %539 = vmatprep.mubr.bf16.mxu0 %v219
  %540 = vmatmul.mubr.bf16.gmra.mrb[0].mxu0 %v218
  %v541 = vpop.f32.mrb[0].mxu0
  %v542 = vadd.f32 0.0, %v541
  %v543 = vpop.f32.mrb[0].mxu0
  %v544 = vpop.f32.mrb[0].mxu0
  %v545 = vadd.f32 0.0, %v544
  %v546 = vpop.f32.mrb[0].mxu0
  %547 = vdwg.mxu0
  %548 = vmatprep.subr.bf16.mxu0 0
  %549 = vmatpush1.bf16.msra.mxu0 %v419
  %550 = vmatprep.subr.bf16.mxu0 0
  %551 = vmatpush1.bf16.msra.mxu0 %v420
  %552 = vmatprep.subr.bf16.mxu0 0
  %553 = vmatpush1.bf16.msra.mxu0 %v421
  %554 = vmatprep.subr.bf16.mxu0 0
  %555 = vmatpush1.bf16.msra.mxu0 %v422
  %556 = vmatprep.subr.bf16.mxu0 0
  %557 = vmatpush1.bf16.msra.mxu0 %v423
  %558 = vmatprep.subr.bf16.mxu0 0
  %559 = vmatpush1.bf16.msra.mxu0 %v424
  %560 = vmatprep.subr.bf16.mxu0 0
  %561 = vmatpush1.bf16.msra.mxu0 %v425
  %562 = vmatprep.subr.bf16.mxu0 0
  %563 = vmatpush1.bf16.msra.mxu0 %v426
  %564 = vmatprep.subr.bf16.mxu0 0
  %565 = vmatpush1.bf16.msra.mxu0 %v427
  %566 = vmatprep.subr.bf16.mxu0 0
  %567 = vmatpush1.bf16.msra.mxu0 %v428
  %568 = vmatprep.subr.bf16.mxu0 0
  %569 = vmatpush1.bf16.msra.mxu0 %v429
  %570 = vmatprep.subr.bf16.mxu0 0
  %571 = vmatpush1.bf16.msra.mxu0 %v430
  %572 = vmatprep.subr.bf16.mxu0 0
  %573 = vmatpush1.bf16.msra.mxu0 %v431
  %574 = vmatprep.subr.bf16.mxu0 0
  %575 = vmatpush1.bf16.msra.mxu0 %v432
  %576 = vmatprep.subr.bf16.mxu0 0
  %577 = vmatpush1.bf16.msra.mxu0 %v433
  %578 = vmatprep.subr.bf16.mxu0 0
  %579 = vmatpush1.bf16.msra.mxu0 %v434
  %580 = vmatprep.mubr.bf16.mxu0 %v206
  %581 = vmatmul.mubr.bf16.gmra.mrb[0].mxu0 %v205
  %v582 = vpop.f32.mrb[0].mxu0
  %v583 = vadd.f32 %v518, %v582
  %v584 = vpop.f32.mrb[0].mxu0
  %v585 = vpop.f32.mrb[0].mxu0
  %v586 = vadd.f32 %v521, %v585
  %v587 = vpop.f32.mrb[0].mxu0
  %588 = vmatprep.mubr.bf16.mxu0 %v211
  %589 = vmatmul.mubr.bf16.gmra.mrb[0].mxu0 %v210
  %v590 = vpop.f32.mrb[0].mxu0
  %v591 = vadd.f32 %v526, %v590
  %v592 = vpop.f32.mrb[0].mxu0
  %v593 = vpop.f32.mrb[0].mxu0
  %v594 = vadd.f32 %v529, %v593
  %v595 = vpop.f32.mrb[0].mxu0
  %596 = vmatprep.mubr.bf16.mxu0 %v216
  %597 = vmatmul.mubr.bf16.gmra.mrb[0].mxu0 %v215
  %v598 = vpop.f32.mrb[0].mxu0
  %v599 = vadd.f32 %v534, %v598
  %v600 = vpop.f32.mrb[0].mxu0
  %v601 = vpop.f32.mrb[0].mxu0
  %v602 = vadd.f32 %v537, %v601
  %v603 = vpop.f32.mrb[0].mxu0
  %604 = vmatprep.mubr.bf16.mxu0 %v221
  %605 = vmatmul.mubr.bf16.gmra.mrb[0].mxu0 %v220
  %v606 = vpop.f32.mrb[0].mxu0
  %v607 = vadd.f32 %v542, %v606
  %v608 = vpop.f32.mrb[0].mxu0
  %v609 = vpop.f32.mrb[0].mxu0
  %v610 = vadd.f32 %v545, %v609
  %v611 = vpop.f32.mrb[0].mxu0
  %612 = vdwg.mxu0
  %613 = vmatprep.subr.bf16.mxu0 0
  %614 = vmatpush1.bf16.msra.mxu0 %v435
  %615 = vmatprep.subr.bf16.mxu0 0
  %616 = vmatpush1.bf16.msra.mxu0 %v436
  %617 = vmatprep.subr.bf16.mxu0 0
  %618 = vmatpush1.bf16.msra.mxu0 %v437
  %619 = vmatprep.subr.bf16.mxu0 0
  %620 = vmatpush1.bf16.msra.mxu0 %v438
  %621 = vmatprep.subr.bf16.mxu0 0
  %622 = vmatpush1.bf16.msra.mxu0 %v439
  %623 = vmatprep.subr.bf16.mxu0 0
  %624 = vmatpush1.bf16.msra.mxu0 %v440
  %625 = vmatprep.subr.bf16.mxu0 0
  %626 = vmatpush1.bf16.msra.mxu0 %v441
  %627 = vmatprep.subr.bf16.mxu0 0
  %628 = vmatpush1.bf16.msra.mxu0 %v442
  %629 = vmatprep.subr.bf16.mxu0 0
  %630 = vmatpush1.bf16.msra.mxu0 0
  %631 = vmatprep.subr.bf16.mxu0 0
  %632 = vmatpush1.bf16.msra.mxu0 0
  %633 = vmatprep.subr.bf16.mxu0 0
  %634 = vmatpush1.bf16.msra.mxu0 0
  %635 = vmatprep.subr.bf16.mxu0 0
  %636 = vmatpush1.bf16.msra.mxu0 0
  %637 = vmatprep.subr.bf16.mxu0 0
  %638 = vmatpush1.bf16.msra.mxu0 0
  %639 = vmatprep.subr.bf16.mxu0 0
  %640 = vmatpush1.bf16.msra.mxu0 0
  %641 = vmatprep.subr.bf16.mxu0 0
  %642 = vmatpush1.bf16.msra.mxu0 0
  %643 = vmatprep.subr.bf16.mxu0 0
  %644 = vmatpush1.bf16.msra.mxu0 0
  %645 = vmatprep.mubr.bf16.mxu0 0
  %646 = vmatmul.mubr.bf16.gmra.mrb[0].mxu0 %v207
  %v647 = vpop.f32.mrb[0].mxu0
  %v648 = vadd.f32 %v583, %v647
  %v649 = vpop.f32.mrb[0].mxu0
  %v650 = vpop.f32.mrb[0].mxu0
  %v651 = vadd.f32 %v586, %v650
  %v652 = vpop.f32.mrb[0].mxu0
  %653 = vmatprep.mubr.bf16.mxu0 0
  %654 = vmatmul.mubr.bf16.gmra.mrb[0].mxu0 %v212
  %v655 = vpop.f32.mrb[0].mxu0
  %v656 = vadd.f32 %v591, %v655
  %v657 = vpop.f32.mrb[0].mxu0
  %v658 = vpop.f32.mrb[0].mxu0
  %v659 = vadd.f32 %v594, %v658
  %v660 = vpop.f32.mrb[0].mxu0
  %661 = vmatprep.mubr.bf16.mxu0 0
  %662 = vmatmul.mubr.bf16.gmra.mrb[0].mxu0 %v217
  %v663 = vpop.f32.mrb[0].mxu0
  %v664 = vadd.f32 %v599, %v663
  %v665 = vpop.f32.mrb[0].mxu0
  %v666 = vpop.f32.mrb[0].mxu0
  %v667 = vadd.f32 %v602, %v666
  %v668 = vpop.f32.mrb[0].mxu0
  %669 = vmatprep.mubr.bf16.mxu0 0
  %670 = vmatmul.mubr.bf16.gmra.mrb[0].mxu0 %v222
  %v671 = vpop.f32.mrb[0].mxu0
  %v672 = vadd.f32 %v607, %v671
  %v673 = vpop.f32.mrb[0].mxu0
  %v674 = vpop.f32.mrb[0].mxu0
  %v675 = vadd.f32 %v610, %v674
  %v676 = vpop.f32.mrb[0].mxu0
  %677 = vdwg.mxu0
  %v678 = vadd.f32 %v27, %v648
  %v679 = vadd.f32 %v28, %v651
  %v680 = vadd.f32 %v29, %v656
  %v681 = vadd.f32 %v30, %v659
  %v682 = vadd.f32 %v31, %v664
  %v683 = vadd.f32 %v32, %v667
  %v684 = vadd.f32 %v33, %v672
  %v685 = vadd.f32 %v34, %v675
  %686 = vst [vmem:[#allocation2] sm:$0xff] %v678
  %687 = vst [vmem:[#allocation2 + $0x8] sm:$0xff] %v679
  %688 = vst [vmem:[#allocation2 + $0x10] sm:$0xff] %v680
  %689 = vst [vmem:[#allocation2 + $0x18] sm:$0xff] %v681
  %690 = vst [vmem:[#allocation2 + $0x20] sm:$0xff] %v682
  %691 = vst [vmem:[#allocation2 + $0x28] sm:$0xff] %v683
  %692 = vst [vmem:[#allocation2 + $0x30] sm:$0xff] %v684
  %693 = vst [vmem:[#allocation2 + $0x38] sm:$0xff] %v685
  // Predicated region
  $region18: #{partial_resnet_pfyl_forward.8} parent=0 // pred_check
    %p694 = pneg %p15
  $region19: #{partial_resnet_pfyl_forward.8} parent=0 // pred_check_branch
    %696 = sbr.rel (%p694) target = $region21
  $region20: #{partial_resnet_pfyl_forward.8} parent=0 // pred_region
    %v697 = vld [vmem:[#allocation2] sm:$0xff]
    %v698 = vld [vmem:[#allocation2 + $0x8] sm:$0xff]
    %v699 = vld [vmem:[#allocation2 + $0x10] sm:$0xff]
    %v700 = vld [vmem:[#allocation2 + $0x18] sm:$0xff]
    %v701 = vld [vmem:[#allocation2 + $0x20] sm:$0xff]
    %v702 = vld [vmem:[#allocation2 + $0x28] sm:$0xff]
    %v703 = vld [vmem:[#allocation2 + $0x30] sm:$0xff]
    %v704 = vld [vmem:[#allocation2 + $0x38] sm:$0xff]
    %v705 = vld [vmem:[%s2] sm:$0x1]
    %v707 = vlaneseq
    %v708 = vshrl.u32 %v707, 7
    %v709 = vsub.s32 0, %v708
    %v710 = vrot.slane %v705, %v709
    %v712 = vadd.f32 %v697, %v710
    %v713 = vadd.f32 %v698, %v710
    %v714 = vadd.f32 %v699, %v710
    %v715 = vadd.f32 %v700, %v710
    %v716 = vadd.f32 %v701, %v710
    %v717 = vadd.f32 %v702, %v710
    %v718 = vadd.f32 %v703, %v710
    %v719 = vadd.f32 %v704, %v710
    %v720 = vmax.f32 %v712, 0.0
    %v721 = vmax.f32 %v713, 0.0
    %v722 = vmax.f32 %v714, 0.0
    %v723 = vmax.f32 %v715, 0.0
    %v724 = vmax.f32 %v716, 0.0
    %v725 = vmax.f32 %v717, 0.0
    %v726 = vmax.f32 %v718, 0.0
    %v727 = vmax.f32 %v719, 0.0
    %728 = vst [vmem:[%s3] sm:$0xff] %v720
    %729 = vst [vmem:[%s3 + $0x8] sm:$0xff] %v721
    %730 = vst [vmem:[%s3 + $0x10] sm:$0xff] %v722
    %731 = vst [vmem:[%s3 + $0x18] sm:$0xff] %v723
    %732 = vst [vmem:[%s3 + $0x20] sm:$0xff] %v724
    %733 = vst [vmem:[%s3 + $0x28] sm:$0xff] %v725
    %734 = vst [vmem:[%s3 + $0x30] sm:$0xff] %v726
    %735 = vst [vmem:[%s3 + $0x38] sm:$0xff] %v727
  $region21: #{partial_resnet_pfyl_forward.8} parent=0 // pred_fallthru
    _
  // Predicated region
  $region22: #{partial_resnet_pfyl_forward.8} parent=0 // pred_check
    _
  $region23: #{partial_resnet_pfyl_forward.8} parent=0 // pred_check_branch
    %737 = sbr.rel (0) target = $region25
  $region24: #{partial_resnet_pfyl_forward.8} parent=0 // pred_region
    _
  $region25: #{partial_resnet_pfyl_forward.8} parent=0 // pred_fallthru
    _
  // Predicated region
  $region26: #{partial_resnet_pfyl_forward.8} parent=0 // pred_check
    _
  $region27: #{partial_resnet_pfyl_forward.8} parent=0 // pred_check_branch
    %739 = sbr.rel (0) target = $region29
  $region28: #{partial_resnet_pfyl_forward.8} parent=0 // pred_region
    _
  $region29: #{partial_resnet_pfyl_forward.8} parent=0 // pred_fallthru
    _

// kernel: partial_resnet_pfyl_forward.12
$region0: #{partial_resnet_pfyl_forward.12}
  #allocation0 [shape = 'u32[]', space=smem, size = 0x4, offset = 0x4, fixed_abs, tag = 'smem constant byte address 0x4 - core index']
  #allocation1 [shape = 'u32[144,128]{1,0:T(1,128)}', space=vmem, size = 0x12000, scoped, tag = 'internal scratch']
  #allocation2 [shape = 'f32[64,128]{1,0:T(8,128)}', space=vmem, size = 0x8000, scoped, tag = 'scratch operand']
  %s0 = inlined_call_operand.vmem [shape: bf16[64,128], index: 0, kind: input, shape index: {}]
  %s1 = inlined_call_operand.vmem [shape: bf16[128,128], index: 1, kind: input, shape index: {}]
  %s2 = inlined_call_operand.vmem [shape: f32[1,128], index: 2, kind: input, shape index: {}]
  %s3 = inlined_call_operand.vmem [shape: f32[64,128], index: 3, kind: output, shape index: {}]
  %s4 = sld [smem:[#allocation0]]
  $region30: #{partial_resnet_pfyl_forward.12} parent=0
    _
  %s6 = ssub.s32 1, %s4
  %s7 = scalar_select 0, %s6, %s4
  // Predicated region
  $region2: #{partial_resnet_pfyl_forward.12} parent=0 // pred_check
    _
  $region3: #{partial_resnet_pfyl_forward.12} parent=0 // pred_check_branch
    %9 = sbr.rel (0) target = $region5
  $region4: #{partial_resnet_pfyl_forward.12} parent=0 // pred_region
    _
  $region5: #{partial_resnet_pfyl_forward.12} parent=0 // pred_fallthru
    _
  // Predicated region
  $region6: #{partial_resnet_pfyl_forward.12} parent=0 // pred_check
    _
  $region7: #{partial_resnet_pfyl_forward.12} parent=0 // pred_check_branch
    %11 = sbr.rel (0) target = $region9
  $region8: #{partial_resnet_pfyl_forward.12} parent=0 // pred_region
    _
  $region9: #{partial_resnet_pfyl_forward.12} parent=0 // pred_fallthru
    _
  // Predicated region
  $region10: #{partial_resnet_pfyl_forward.12} parent=0 // pred_check
    _
  $region11: #{partial_resnet_pfyl_forward.12} parent=0 // pred_check_branch
    %13 = sbr.rel (0) target = $region13
  $region12: #{partial_resnet_pfyl_forward.12} parent=0 // pred_region
    _
  $region13: #{partial_resnet_pfyl_forward.12} parent=0 // pred_fallthru
    _
  %p15 = scmp.eq.s32.totalorder 0, 0
  // Predicated region
  $region14: #{partial_resnet_pfyl_forward.12} parent=0 // pred_check
    %p16 = pneg %p15
  $region15: #{partial_resnet_pfyl_forward.12} parent=0 // pred_check_branch
    %18 = sbr.rel (%p16) target = $region17
  $region16: #{partial_resnet_pfyl_forward.12} parent=0 // pred_region
    %19 = vst [vmem:[#allocation2] sm:$0xff] 0.0
    %20 = vst [vmem:[#allocation2 + $0x8] sm:$0xff] 0.0
    %21 = vst [vmem:[#allocation2 + $0x10] sm:$0xff] 0.0
    %22 = vst [vmem:[#allocation2 + $0x18] sm:$0xff] 0.0
    %23 = vst [vmem:[#allocation2 + $0x20] sm:$0xff] 0.0
    %24 = vst [vmem:[#allocation2 + $0x28] sm:$0xff] 0.0
    %25 = vst [vmem:[#allocation2 + $0x30] sm:$0xff] 0.0
    %26 = vst [vmem:[#allocation2 + $0x38] sm:$0xff] 0.0
  $region17: #{partial_resnet_pfyl_forward.12} parent=0 // pred_fallthru
    _
  %v27 = vld [vmem:[#allocation2] sm:$0xff]
  %v28 = vld [vmem:[#allocation2 + $0x8] sm:$0xff]
  %v29 = vld [vmem:[#allocation2 + $0x10] sm:$0xff]
  %v30 = vld [vmem:[#allocation2 + $0x18] sm:$0xff]
  %v31 = vld [vmem:[#allocation2 + $0x20] sm:$0xff]
  %v32 = vld [vmem:[#allocation2 + $0x28] sm:$0xff]
  %v33 = vld [vmem:[#allocation2 + $0x30] sm:$0xff]
  %v34 = vld [vmem:[#allocation2 + $0x38] sm:$0xff]
  %v35 = vld [vmem:[%s0] sm:$0xf]
  %v36 = vld [vmem:[%s0 + $0x4] sm:$0xf]
  %v37 = vld [vmem:[%s0 + $0x8] sm:$0xf]
  %v38 = vld [vmem:[%s0 + $0xc] sm:$0xf]
  %v39 = vld [vmem:[%s0 + $0x10] sm:$0xf]
  %v40 = vld [vmem:[%s0 + $0x14] sm:$0xf]
  %v41 = vld [vmem:[%s0 + $0x18] sm:$0xf]
  %v42 = vld [vmem:[%s0 + $0x1c] sm:$0xf]
  %v43 = vld [vmem:[%s1] sm:$0xf]
  %v44 = vld [vmem:[%s1 + $0x4] sm:$0xf]
  %v45 = vld [vmem:[%s1 + $0x8] sm:$0xf]
  %v46 = vld [vmem:[%s1 + $0xc] sm:$0xf]
  %v47 = vld [vmem:[%s1 + $0x10] sm:$0xf]
  %v48 = vld [vmem:[%s1 + $0x14] sm:$0xf]
  %v49 = vld [vmem:[%s1 + $0x18] sm:$0xf]
  %v50 = vld [vmem:[%s1 + $0x1c] sm:$0xf]
  %v51 = vld [vmem:[%s1 + $0x20] sm:$0xf]
  %v52 = vld [vmem:[%s1 + $0x24] sm:$0xf]
  %v53 = vld [vmem:[%s1 + $0x28] sm:$0xf]
  %v54 = vld [vmem:[%s1 + $0x2c] sm:$0xf]
  %v55 = vld [vmem:[%s1 + $0x30] sm:$0xf]
  %v56 = vld [vmem:[%s1 + $0x34] sm:$0xf]
  %v57 = vld [vmem:[%s1 + $0x38] sm:$0xf]
  %v58 = vld [vmem:[%s1 + $0x3c] sm:$0xf]
  %v67 = vunpack.c.l.b16 %v35
  %v68 = vunpack.c.l.b16 %v36
  %v69 = vunpack.c.l.b16 %v37
  %v70 = vunpack.c.l.b16 %v38
  %v71 = vunpack.c.l.b16 %v39
  %v72 = vunpack.c.l.b16 %v40
  %v73 = vunpack.c.l.b16 %v41
  %v74 = vunpack.c.l.b16 %v42
  %v75 = vpack.c.b16 %v68, %v67
  %v76 = vpack.c.b16 %v70, %v69
  %v77 = vpack.c.b16 %v72, %v71
  %v78 = vpack.c.b16 %v74, %v73
  %v99 = vunpack.c.l.b16 %v43
  %v100 = vunpack.c.l.b16 %v44
  %v101 = vunpack.c.l.b16 %v45
  %v102 = vunpack.c.l.b16 %v46
  %v103 = vunpack.c.l.b16 %v47
  %v104 = vunpack.c.l.b16 %v48
  %v105 = vunpack.c.l.b16 %v49
  %v106 = vunpack.c.l.b16 %v50
  %v107 = vunpack.c.l.b16 %v51
  %v108 = vunpack.c.l.b16 %v52
  %v109 = vunpack.c.l.b16 %v53
  %v110 = vunpack.c.l.b16 %v54
  %v111 = vunpack.c.l.b16 %v55
  %v112 = vunpack.c.l.b16 %v56
  %v113 = vunpack.c.l.b16 %v57
  %v114 = vunpack.c.l.b16 %v58
  %v115 = vpack.c.b16 %v100, %v99
  %v116 = vpack.c.b16 %v102, %v101
  %v117 = vpack.c.b16 %v104, %v103
  %v118 = vpack.c.b16 %v106, %v105
  %v119 = vpack.c.b16 %v108, %v107
  %v120 = vpack.c.b16 %v110, %v109
  %v121 = vpack.c.b16 %v112, %v111
  %v122 = vpack.c.b16 %v114, %v113
  %131 = vmatprep.subr.bf16.mxu0 0
  %132 = vmatpush1.bf16.msra.mxu0 %v115
  %133 = vmatprep.subr.bf16.mxu0 0
  %134 = vmatpush1.bf16.msra.mxu0 %v116
  %135 = vmatprep.subr.bf16.mxu0 0
  %136 = vmatpush1.bf16.msra.mxu0 %v117
  %137 = vmatprep.subr.bf16.mxu0 0
  %138 = vmatpush1.bf16.msra.mxu0 %v118
  %139 = vmatprep.subr.bf16.mxu0 0
  %140 = vmatpush1.bf16.msra.mxu0 %v119
  %141 = vmatprep.subr.bf16.mxu0 0
  %142 = vmatpush1.bf16.msra.mxu0 %v120
  %143 = vmatprep.subr.bf16.mxu0 0
  %144 = vmatpush1.bf16.msra.mxu0 %v121
  %145 = vmatprep.subr.bf16.mxu0 0
  %146 = vmatpush1.bf16.msra.mxu0 %v122
  %147 = vmatprep.subr.bf16.mxu0 0
  %148 = vmatpush1.bf16.msra.mxu0 0
  %149 = vmatprep.subr.bf16.mxu0 0
  %150 = vmatpush1.bf16.msra.mxu0 0
  %151 = vmatprep.subr.bf16.mxu0 0
  %152 = vmatpush1.bf16.msra.mxu0 0
  %153 = vmatprep.subr.bf16.mxu0 0
  %154 = vmatpush1.bf16.msra.mxu0 0
  %155 = vmatprep.subr.bf16.mxu0 0
  %156 = vmatpush1.bf16.msra.mxu0 0
  %157 = vmatprep.subr.bf16.mxu0 0
  %158 = vmatpush1.bf16.msra.mxu0 0
  %159 = vmatprep.subr.bf16.mxu0 0
  %160 = vmatpush1.bf16.msra.mxu0 0
  %161 = vmatprep.subr.bf16.mxu0 0
  %162 = vmatpush1.bf16.msra.mxu0 0
  %163 = vmatprep.mubr.bf16.mxu0 0
  %164 = vmatmul.mubr.bf16.gmra.mrb[0].mxu0 %v75
  %v165 = vpop.f32.mrb[0].mxu0
  %v166 = vadd.f32 0.0, %v165
  %v167 = vpop.f32.mrb[0].mxu0
  %v168 = vpop.f32.mrb[0].mxu0
  %v169 = vadd.f32 0.0, %v168
  %v170 = vpop.f32.mrb[0].mxu0
  %171 = vmatprep.mubr.bf16.mxu0 0
  %172 = vmatmul.mubr.bf16.gmra.mrb[0].mxu0 %v76
  %v173 = vpop.f32.mrb[0].mxu0
  %v174 = vadd.f32 0.0, %v173
  %v175 = vpop.f32.mrb[0].mxu0
  %v176 = vpop.f32.mrb[0].mxu0
  %v177 = vadd.f32 0.0, %v176
  %v178 = vpop.f32.mrb[0].mxu0
  %179 = vmatprep.mubr.bf16.mxu0 0
  %180 = vmatmul.mubr.bf16.gmra.mrb[0].mxu0 %v77
  %v181 = vpop.f32.mrb[0].mxu0
  %v182 = vadd.f32 0.0, %v181
  %v183 = vpop.f32.mrb[0].mxu0
  %v184 = vpop.f32.mrb[0].mxu0
  %v185 = vadd.f32 0.0, %v184
  %v186 = vpop.f32.mrb[0].mxu0
  %187 = vmatprep.mubr.bf16.mxu0 0
  %188 = vmatmul.mubr.bf16.gmra.mrb[0].mxu0 %v78
  %v189 = vpop.f32.mrb[0].mxu0
  %v190 = vadd.f32 0.0, %v189
  %v191 = vpop.f32.mrb[0].mxu0
  %v192 = vpop.f32.mrb[0].mxu0
  %v193 = vadd.f32 0.0, %v192
  %v194 = vpop.f32.mrb[0].mxu0
  %195 = vdwg.mxu0
  %v196 = vadd.f32 %v27, %v166
  %v197 = vadd.f32 %v28, %v169
  %v198 = vadd.f32 %v29, %v174
  %v199 = vadd.f32 %v30, %v177
  %v200 = vadd.f32 %v31, %v182
  %v201 = vadd.f32 %v32, %v185
  %v202 = vadd.f32 %v33, %v190
  %v203 = vadd.f32 %v34, %v193
  %204 = vst [vmem:[#allocation2] sm:$0xff] %v196
  %205 = vst [vmem:[#allocation2 + $0x8] sm:$0xff] %v197
  %206 = vst [vmem:[#allocation2 + $0x10] sm:$0xff] %v198
  %207 = vst [vmem:[#allocation2 + $0x18] sm:$0xff] %v199
  %208 = vst [vmem:[#allocation2 + $0x20] sm:$0xff] %v200
  %209 = vst [vmem:[#allocation2 + $0x28] sm:$0xff] %v201
  %210 = vst [vmem:[#allocation2 + $0x30] sm:$0xff] %v202
  %211 = vst [vmem:[#allocation2 + $0x38] sm:$0xff] %v203
  // Predicated region
  $region18: #{partial_resnet_pfyl_forward.12} parent=0 // pred_check
    %p212 = pneg %p15
  $region19: #{partial_resnet_pfyl_forward.12} parent=0 // pred_check_branch
    %214 = sbr.rel (%p212) target = $region21
  $region20: #{partial_resnet_pfyl_forward.12} parent=0 // pred_region
    %v215 = vld [vmem:[#allocation2] sm:$0xff]
    %v216 = vld [vmem:[#allocation2 + $0x8] sm:$0xff]
    %v217 = vld [vmem:[#allocation2 + $0x10] sm:$0xff]
    %v218 = vld [vmem:[#allocation2 + $0x18] sm:$0xff]
    %v219 = vld [vmem:[#allocation2 + $0x20] sm:$0xff]
    %v220 = vld [vmem:[#allocation2 + $0x28] sm:$0xff]
    %v221 = vld [vmem:[#allocation2 + $0x30] sm:$0xff]
    %v222 = vld [vmem:[#allocation2 + $0x38] sm:$0xff]
    %v223 = vld [vmem:[%s2] sm:$0x1]
    %v225 = vlaneseq
    %v226 = vshrl.u32 %v225, 7
    %v227 = vsub.s32 0, %v226
    %v228 = vrot.slane %v223, %v227
    %v230 = vadd.f32 %v215, %v228
    %v231 = vadd.f32 %v216, %v228
    %v232 = vadd.f32 %v217, %v228
    %v233 = vadd.f32 %v218, %v228
    %v234 = vadd.f32 %v219, %v228
    %v235 = vadd.f32 %v220, %v228
    %v236 = vadd.f32 %v221, %v228
    %v237 = vadd.f32 %v222, %v228
    %238 = vst [vmem:[%s3] sm:$0xff] %v230
    %239 = vst [vmem:[%s3 + $0x8] sm:$0xff] %v231
    %240 = vst [vmem:[%s3 + $0x10] sm:$0xff] %v232
    %241 = vst [vmem:[%s3 + $0x18] sm:$0xff] %v233
    %242 = vst [vmem:[%s3 + $0x20] sm:$0xff] %v234
    %243 = vst [vmem:[%s3 + $0x28] sm:$0xff] %v235
    %244 = vst [vmem:[%s3 + $0x30] sm:$0xff] %v236
    %245 = vst [vmem:[%s3 + $0x38] sm:$0xff] %v237
  $region21: #{partial_resnet_pfyl_forward.12} parent=0 // pred_fallthru
    _
  // Predicated region
  $region22: #{partial_resnet_pfyl_forward.12} parent=0 // pred_check
    _
  $region23: #{partial_resnet_pfyl_forward.12} parent=0 // pred_check_branch
    %247 = sbr.rel (0) target = $region25
  $region24: #{partial_resnet_pfyl_forward.12} parent=0 // pred_region
    _
  $region25: #{partial_resnet_pfyl_forward.12} parent=0 // pred_fallthru
    _
  // Predicated region
  $region26: #{partial_resnet_pfyl_forward.12} parent=0 // pred_check
    _
  $region27: #{partial_resnet_pfyl_forward.12} parent=0 // pred_check_branch
    %249 = sbr.rel (0) target = $region29
  $region28: #{partial_resnet_pfyl_forward.12} parent=0 // pred_region
    _
  $region29: #{partial_resnet_pfyl_forward.12} parent=0 // pred_fallthru
    _

// kernel: partial_resnet_pfyl_forward.9
$region0: #{partial_resnet_pfyl_forward.9}
  #allocation0 [shape = 'u32[]', space=smem, size = 0x4, offset = 0x4, fixed_abs, tag = 'smem constant byte address 0x4 - core index']
  #allocation1 [shape = 'u32[144,128]{1,0:T(1,128)}', space=vmem, size = 0x12000, scoped, tag = 'internal scratch']
  #allocation2 [shape = 'f32[64,128]{1,0:T(8,128)}', space=vmem, size = 0x8000, scoped, tag = 'scratch operand']
  %s0 = inlined_call_operand.vmem [shape: bf16[64,640], index: 0, kind: input, shape index: {}]
  %s1 = inlined_call_operand.vmem [shape: bf16[640,128], index: 1, kind: input, shape index: {}]
  %s2 = inlined_call_operand.vmem [shape: f32[1,128], index: 2, kind: input, shape index: {}]
  %s3 = inlined_call_operand.vmem [shape: f32[64,128], index: 3, kind: input, shape index: {}]
  %s4 = inlined_call_operand.vmem [shape: f32[64,128], index: 4, kind: output, shape index: {}]
  %s5 = sld [smem:[#allocation0]]
  $region34: #{partial_resnet_pfyl_forward.9} parent=0
    _
  %s7 = ssub.s32 1, %s5
  %s8 = scalar_select 0, %s7, %s5
  // Predicated region
  $region2: #{partial_resnet_pfyl_forward.9} parent=0 // pred_check
    _
  $region3: #{partial_resnet_pfyl_forward.9} parent=0 // pred_check_branch
    %10 = sbr.rel (0) target = $region5
  $region4: #{partial_resnet_pfyl_forward.9} parent=0 // pred_region
    _
  $region5: #{partial_resnet_pfyl_forward.9} parent=0 // pred_fallthru
    _
  // Predicated region
  $region6: #{partial_resnet_pfyl_forward.9} parent=0 // pred_check
    _
  $region7: #{partial_resnet_pfyl_forward.9} parent=0 // pred_check_branch
    %12 = sbr.rel (0) target = $region9
  $region8: #{partial_resnet_pfyl_forward.9} parent=0 // pred_region
    _
  $region9: #{partial_resnet_pfyl_forward.9} parent=0 // pred_fallthru
    _
  // Predicated region
  $region10: #{partial_resnet_pfyl_forward.9} parent=0 // pred_check
    _
  $region11: #{partial_resnet_pfyl_forward.9} parent=0 // pred_check_branch
    %14 = sbr.rel (0) target = $region13
  $region12: #{partial_resnet_pfyl_forward.9} parent=0 // pred_region
    _
  $region13: #{partial_resnet_pfyl_forward.9} parent=0 // pred_fallthru
    _
  // Predicated region
  $region14: #{partial_resnet_pfyl_forward.9} parent=0 // pred_check
    _
  $region15: #{partial_resnet_pfyl_forward.9} parent=0 // pred_check_branch
    %16 = sbr.rel (0) target = $region17
  $region16: #{partial_resnet_pfyl_forward.9} parent=0 // pred_region
    _
  $region17: #{partial_resnet_pfyl_forward.9} parent=0 // pred_fallthru
    _
  %p18 = scmp.eq.s32.totalorder 0, 0
  // Predicated region
  $region18: #{partial_resnet_pfyl_forward.9} parent=0 // pred_check
    %p19 = pneg %p18
  $region19: #{partial_resnet_pfyl_forward.9} parent=0 // pred_check_branch
    %21 = sbr.rel (%p19) target = $region21
  $region20: #{partial_resnet_pfyl_forward.9} parent=0 // pred_region
    %22 = vst [vmem:[#allocation2] sm:$0xff] 0.0
    %23 = vst [vmem:[#allocation2 + $0x8] sm:$0xff] 0.0
    %24 = vst [vmem:[#allocation2 + $0x10] sm:$0xff] 0.0
    %25 = vst [vmem:[#allocation2 + $0x18] sm:$0xff] 0.0
    %26 = vst [vmem:[#allocation2 + $0x20] sm:$0xff] 0.0
    %27 = vst [vmem:[#allocation2 + $0x28] sm:$0xff] 0.0
    %28 = vst [vmem:[#allocation2 + $0x30] sm:$0xff] 0.0
    %29 = vst [vmem:[#allocation2 + $0x38] sm:$0xff] 0.0
  $region21: #{partial_resnet_pfyl_forward.9} parent=0 // pred_fallthru
    _
  %v30 = vld [vmem:[#allocation2] sm:$0xff]
  %v31 = vld [vmem:[#allocation2 + $0x8] sm:$0xff]
  %v32 = vld [vmem:[#allocation2 + $0x10] sm:$0xff]
  %v33 = vld [vmem:[#allocation2 + $0x18] sm:$0xff]
  %v34 = vld [vmem:[#allocation2 + $0x20] sm:$0xff]
  %v35 = vld [vmem:[#allocation2 + $0x28] sm:$0xff]
  %v36 = vld [vmem:[#allocation2 + $0x30] sm:$0xff]
  %v37 = vld [vmem:[#allocation2 + $0x38] sm:$0xff]
  %v38 = vld [vmem:[%s0] sm:$0xff]
  %v39 = vld [vmem:[%s0 + $0x8] sm:$0xff]
  %v40 = vld [vmem:[%s0 + $0x10] sm:$0xf]
  %v41 = vld [vmem:[%s0 + $0x14] sm:$0xff]
  %v42 = vld [vmem:[%s0 + $0x1c] sm:$0xff]
  %v43 = vld [vmem:[%s0 + $0x24] sm:$0xf]
  %v44 = vld [vmem:[%s0 + $0x28] sm:$0xff]
  %v45 = vld [vmem:[%s0 + $0x30] sm:$0xff]
  %v46 = vld [vmem:[%s0 + $0x38] sm:$0xf]
  %v47 = vld [vmem:[%s0 + $0x3c] sm:$0xff]
  %v48 = vld [vmem:[%s0 + $0x44] sm:$0xff]
  %v49 = vld [vmem:[%s0 + $0x4c] sm:$0xf]
  %v50 = vld [vmem:[%s0 + $0x50] sm:$0xff]
  %v51 = vld [vmem:[%s0 + $0x58] sm:$0xff]
  %v52 = vld [vmem:[%s0 + $0x60] sm:$0xf]
  %v53 = vld [vmem:[%s0 + $0x64] sm:$0xff]
  %v54 = vld [vmem:[%s0 + $0x6c] sm:$0xff]
  %v55 = vld [vmem:[%s0 + $0x74] sm:$0xf]
  %v56 = vld [vmem:[%s0 + $0x78] sm:$0xff]
  %v57 = vld [vmem:[%s0 + $0x80] sm:$0xff]
  %v58 = vld [vmem:[%s0 + $0x88] sm:$0xf]
  %v59 = vld [vmem:[%s0 + $0x8c] sm:$0xff]
  %v60 = vld [vmem:[%s0 + $0x94] sm:$0xff]
  %v61 = vld [vmem:[%s0 + $0x9c] sm:$0xf]
  %v62 = vld [vmem:[%s1] sm:$0xf]
  %v63 = vld [vmem:[%s1 + $0x4] sm:$0xf]
  %v64 = vld [vmem:[%s1 + $0x8] sm:$0xf]
  %v65 = vld [vmem:[%s1 + $0xc] sm:$0xf]
  %v66 = vld [vmem:[%s1 + $0x10] sm:$0xf]
  %v67 = vld [vmem:[%s1 + $0x14] sm:$0xf]
  %v68 = vld [vmem:[%s1 + $0x18] sm:$0xf]
  %v69 = vld [vmem:[%s1 + $0x1c] sm:$0xf]
  %v70 = vld [vmem:[%s1 + $0x20] sm:$0xf]
  %v71 = vld [vmem:[%s1 + $0x24] sm:$0xf]
  %v72 = vld [vmem:[%s1 + $0x28] sm:$0xf]
  %v73 = vld [vmem:[%s1 + $0x2c] sm:$0xf]
  %v74 = vld [vmem:[%s1 + $0x30] sm:$0xf]
  %v75 = vld [vmem:[%s1 + $0x34] sm:$0xf]
  %v76 = vld [vmem:[%s1 + $0x38] sm:$0xf]
  %v77 = vld [vmem:[%s1 + $0x3c] sm:$0xf]
  %v78 = vld [vmem:[%s1 + $0x40] sm:$0xf]
  %v79 = vld [vmem:[%s1 + $0x44] sm:$0xf]
  %v80 = vld [vmem:[%s1 + $0x48] sm:$0xf]
  %v81 = vld [vmem:[%s1 + $0x4c] sm:$0xf]
  %v82 = vld [vmem:[%s1 + $0x50] sm:$0xf]
  %v83 = vld [vmem:[%s1 + $0x54] sm:$0xf]
  %v84 = vld [vmem:[%s1 + $0x58] sm:$0xf]
  %v85 = vld [vmem:[%s1 + $0x5c] sm:$0xf]
  %v86 = vld [vmem:[%s1 + $0x60] sm:$0xf]
  %v87 = vld [vmem:[%s1 + $0x64] sm:$0xf]
  %v88 = vld [vmem:[%s1 + $0x68] sm:$0xf]
  %v89 = vld [vmem:[%s1 + $0x6c] sm:$0xf]
  %v90 = vld [vmem:[%s1 + $0x70] sm:$0xf]
  %v91 = vld [vmem:[%s1 + $0x74] sm:$0xf]
  %v92 = vld [vmem:[%s1 + $0x78] sm:$0xf]
  %v93 = vld [vmem:[%s1 + $0x7c] sm:$0xf]
  %v94 = vld [vmem:[%s1 + $0x80] sm:$0xf]
  %v95 = vld [vmem:[%s1 + $0x84] sm:$0xf]
  %v96 = vld [vmem:[%s1 + $0x88] sm:$0xf]
  %v97 = vld [vmem:[%s1 + $0x8c] sm:$0xf]
  %v98 = vld [vmem:[%s1 + $0x90] sm:$0xf]
  %v99 = vld [vmem:[%s1 + $0x94] sm:$0xf]
  %v100 = vld [vmem:[%s1 + $0x98] sm:$0xf]
  %v101 = vld [vmem:[%s1 + $0x9c] sm:$0xf]
  %v102 = vld [vmem:[%s1 + $0xa0] sm:$0xf]
  %v103 = vld [vmem:[%s1 + $0xa4] sm:$0xf]
  %v104 = vld [vmem:[%s1 + $0xa8] sm:$0xf]
  %v105 = vld [vmem:[%s1 + $0xac] sm:$0xf]
  %v106 = vld [vmem:[%s1 + $0xb0] sm:$0xf]
  %v107 = vld [vmem:[%s1 + $0xb4] sm:$0xf]
  %v108 = vld [vmem:[%s1 + $0xb8] sm:$0xf]
  %v109 = vld [vmem:[%s1 + $0xbc] sm:$0xf]
  %v110 = vld [vmem:[%s1 + $0xc0] sm:$0xf]
  %v111 = vld [vmem:[%s1 + $0xc4] sm:$0xf]
  %v112 = vld [vmem:[%s1 + $0xc8] sm:$0xf]
  %v113 = vld [vmem:[%s1 + $0xcc] sm:$0xf]
  %v114 = vld [vmem:[%s1 + $0xd0] sm:$0xf]
  %v115 = vld [vmem:[%s1 + $0xd4] sm:$0xf]
  %v116 = vld [vmem:[%s1 + $0xd8] sm:$0xf]
  %v117 = vld [vmem:[%s1 + $0xdc] sm:$0xf]
  %v118 = vld [vmem:[%s1 + $0xe0] sm:$0xf]
  %v119 = vld [vmem:[%s1 + $0xe4] sm:$0xf]
  %v120 = vld [vmem:[%s1 + $0xe8] sm:$0xf]
  %v121 = vld [vmem:[%s1 + $0xec] sm:$0xf]
  %v122 = vld [vmem:[%s1 + $0xf0] sm:$0xf]
  %v123 = vld [vmem:[%s1 + $0xf4] sm:$0xf]
  %v124 = vld [vmem:[%s1 + $0xf8] sm:$0xf]
  %v125 = vld [vmem:[%s1 + $0xfc] sm:$0xf]
  %v126 = vld [vmem:[%s1 + $0x100] sm:$0xf]
  %v127 = vld [vmem:[%s1 + $0x104] sm:$0xf]
  %v128 = vld [vmem:[%s1 + $0x108] sm:$0xf]
  %v129 = vld [vmem:[%s1 + $0x10c] sm:$0xf]
  %v130 = vld [vmem:[%s1 + $0x110] sm:$0xf]
  %v131 = vld [vmem:[%s1 + $0x114] sm:$0xf]
  %v132 = vld [vmem:[%s1 + $0x118] sm:$0xf]
  %v133 = vld [vmem:[%s1 + $0x11c] sm:$0xf]
  %v134 = vld [vmem:[%s1 + $0x120] sm:$0xf]
  %v135 = vld [vmem:[%s1 + $0x124] sm:$0xf]
  %v136 = vld [vmem:[%s1 + $0x128] sm:$0xf]
  %v137 = vld [vmem:[%s1 + $0x12c] sm:$0xf]
  %v138 = vld [vmem:[%s1 + $0x130] sm:$0xf]
  %v139 = vld [vmem:[%s1 + $0x134] sm:$0xf]
  %v140 = vld [vmem:[%s1 + $0x138] sm:$0xf]
  %v141 = vld [vmem:[%s1 + $0x13c] sm:$0xf]
  %v166 = vunpack.c.l.b16 %v38
  %v167 = vunpack.c.h.b16 %v38
  %v168 = vunpack.c.l.b16 %v39
  %v169 = vunpack.c.h.b16 %v39
  %v170 = vunpack.c.l.b16 %v40
  %v171 = vunpack.c.l.b16 %v41
  %v172 = vunpack.c.h.b16 %v41
  %v173 = vunpack.c.l.b16 %v42
  %v174 = vunpack.c.h.b16 %v42
  %v175 = vunpack.c.l.b16 %v43
  %v176 = vunpack.c.l.b16 %v44
  %v177 = vunpack.c.h.b16 %v44
  %v178 = vunpack.c.l.b16 %v45
  %v179 = vunpack.c.h.b16 %v45
  %v180 = vunpack.c.l.b16 %v46
  %v181 = vunpack.c.l.b16 %v47
  %v182 = vunpack.c.h.b16 %v47
  %v183 = vunpack.c.l.b16 %v48
  %v184 = vunpack.c.h.b16 %v48
  %v185 = vunpack.c.l.b16 %v49
  %v186 = vunpack.c.l.b16 %v50
  %v187 = vunpack.c.h.b16 %v50
  %v188 = vunpack.c.l.b16 %v51
  %v189 = vunpack.c.h.b16 %v51
  %v190 = vunpack.c.l.b16 %v52
  %v191 = vunpack.c.l.b16 %v53
  %v192 = vunpack.c.h.b16 %v53
  %v193 = vunpack.c.l.b16 %v54
  %v194 = vunpack.c.h.b16 %v54
  %v195 = vunpack.c.l.b16 %v55
  %v196 = vunpack.c.l.b16 %v56
  %v197 = vunpack.c.h.b16 %v56
  %v198 = vunpack.c.l.b16 %v57
  %v199 = vunpack.c.h.b16 %v57
  %v200 = vunpack.c.l.b16 %v58
  %v201 = vunpack.c.l.b16 %v59
  %v202 = vunpack.c.h.b16 %v59
  %v203 = vunpack.c.l.b16 %v60
  %v204 = vunpack.c.h.b16 %v60
  %v205 = vunpack.c.l.b16 %v61
  %v206 = vpack.c.b16 %v171, %v166
  %v207 = vpack.c.b16 %v172, %v167
  %v208 = vpack.c.b16 %v173, %v168
  %v209 = vpack.c.b16 %v174, %v169
  %v210 = vpack.c.b16 %v175, %v170
  %v211 = vpack.c.b16 %v181, %v176
  %v212 = vpack.c.b16 %v182, %v177
  %v213 = vpack.c.b16 %v183, %v178
  %v214 = vpack.c.b16 %v184, %v179
  %v215 = vpack.c.b16 %v185, %v180
  %v216 = vpack.c.b16 %v191, %v186
  %v217 = vpack.c.b16 %v192, %v187
  %v218 = vpack.c.b16 %v193, %v188
  %v219 = vpack.c.b16 %v194, %v189
  %v220 = vpack.c.b16 %v195, %v190
  %v221 = vpack.c.b16 %v201, %v196
  %v222 = vpack.c.b16 %v202, %v197
  %v223 = vpack.c.b16 %v203, %v198
  %v224 = vpack.c.b16 %v204, %v199
  %v225 = vpack.c.b16 %v205, %v200
  %v326 = vunpack.c.l.b16 %v62
  %v327 = vunpack.c.l.b16 %v63
  %v328 = vunpack.c.l.b16 %v64
  %v329 = vunpack.c.l.b16 %v65
  %v330 = vunpack.c.l.b16 %v66
  %v331 = vunpack.c.l.b16 %v67
  %v332 = vunpack.c.l.b16 %v68
  %v333 = vunpack.c.l.b16 %v69
  %v334 = vunpack.c.l.b16 %v70
  %v335 = vunpack.c.l.b16 %v71
  %v336 = vunpack.c.l.b16 %v72
  %v337 = vunpack.c.l.b16 %v73
  %v338 = vunpack.c.l.b16 %v74
  %v339 = vunpack.c.l.b16 %v75
  %v340 = vunpack.c.l.b16 %v76
  %v341 = vunpack.c.l.b16 %v77
  %v342 = vunpack.c.l.b16 %v78
  %v343 = vunpack.c.l.b16 %v79
  %v344 = vunpack.c.l.b16 %v80
  %v345 = vunpack.c.l.b16 %v81
  %v346 = vunpack.c.l.b16 %v82
  %v347 = vunpack.c.l.b16 %v83
  %v348 = vunpack.c.l.b16 %v84
  %v349 = vunpack.c.l.b16 %v85
  %v350 = vunpack.c.l.b16 %v86
  %v351 = vunpack.c.l.b16 %v87
  %v352 = vunpack.c.l.b16 %v88
  %v353 = vunpack.c.l.b16 %v89
  %v354 = vunpack.c.l.b16 %v90
  %v355 = vunpack.c.l.b16 %v91
  %v356 = vunpack.c.l.b16 %v92
  %v357 = vunpack.c.l.b16 %v93
  %v358 = vunpack.c.l.b16 %v94
  %v359 = vunpack.c.l.b16 %v95
  %v360 = vunpack.c.l.b16 %v96
  %v361 = vunpack.c.l.b16 %v97
  %v362 = vunpack.c.l.b16 %v98
  %v363 = vunpack.c.l.b16 %v99
  %v364 = vunpack.c.l.b16 %v100
  %v365 = vunpack.c.l.b16 %v101
  %v366 = vunpack.c.l.b16 %v102
  %v367 = vunpack.c.l.b16 %v103
  %v368 = vunpack.c.l.b16 %v104
  %v369 = vunpack.c.l.b16 %v105
  %v370 = vunpack.c.l.b16 %v106
  %v371 = vunpack.c.l.b16 %v107
  %v372 = vunpack.c.l.b16 %v108
  %v373 = vunpack.c.l.b16 %v109
  %v374 = vunpack.c.l.b16 %v110
  %v375 = vunpack.c.l.b16 %v111
  %v376 = vunpack.c.l.b16 %v112
  %v377 = vunpack.c.l.b16 %v113
  %v378 = vunpack.c.l.b16 %v114
  %v379 = vunpack.c.l.b16 %v115
  %v380 = vunpack.c.l.b16 %v116
  %v381 = vunpack.c.l.b16 %v117
  %v382 = vunpack.c.l.b16 %v118
  %v383 = vunpack.c.l.b16 %v119
  %v384 = vunpack.c.l.b16 %v120
  %v385 = vunpack.c.l.b16 %v121
  %v386 = vunpack.c.l.b16 %v122
  %v387 = vunpack.c.l.b16 %v123
  %v388 = vunpack.c.l.b16 %v124
  %v389 = vunpack.c.l.b16 %v125
  %v390 = vunpack.c.l.b16 %v126
  %v391 = vunpack.c.l.b16 %v127
  %v392 = vunpack.c.l.b16 %v128
  %v393 = vunpack.c.l.b16 %v129
  %v394 = vunpack.c.l.b16 %v130
  %v395 = vunpack.c.l.b16 %v131
  %v396 = vunpack.c.l.b16 %v132
  %v397 = vunpack.c.l.b16 %v133
  %v398 = vunpack.c.l.b16 %v134
  %v399 = vunpack.c.l.b16 %v135
  %v400 = vunpack.c.l.b16 %v136
  %v401 = vunpack.c.l.b16 %v137
  %v402 = vunpack.c.l.b16 %v138
  %v403 = vunpack.c.l.b16 %v139
  %v404 = vunpack.c.l.b16 %v140
  %v405 = vunpack.c.l.b16 %v141
  %v406 = vpack.c.b16 %v327, %v326
  %v407 = vpack.c.b16 %v329, %v328
  %v408 = vpack.c.b16 %v331, %v330
  %v409 = vpack.c.b16 %v333, %v332
  %v410 = vpack.c.b16 %v335, %v334
  %v411 = vpack.c.b16 %v337, %v336
  %v412 = vpack.c.b16 %v339, %v338
  %v413 = vpack.c.b16 %v341, %v340
  %v414 = vpack.c.b16 %v343, %v342
  %v415 = vpack.c.b16 %v345, %v344
  %v416 = vpack.c.b16 %v347, %v346
  %v417 = vpack.c.b16 %v349, %v348
  %v418 = vpack.c.b16 %v351, %v350
  %v419 = vpack.c.b16 %v353, %v352
  %v420 = vpack.c.b16 %v355, %v354
  %v421 = vpack.c.b16 %v357, %v356
  %v422 = vpack.c.b16 %v359, %v358
  %v423 = vpack.c.b16 %v361, %v360
  %v424 = vpack.c.b16 %v363, %v362
  %v425 = vpack.c.b16 %v365, %v364
  %v426 = vpack.c.b16 %v367, %v366
  %v427 = vpack.c.b16 %v369, %v368
  %v428 = vpack.c.b16 %v371, %v370
  %v429 = vpack.c.b16 %v373, %v372
  %v430 = vpack.c.b16 %v375, %v374
  %v431 = vpack.c.b16 %v377, %v376
  %v432 = vpack.c.b16 %v379, %v378
  %v433 = vpack.c.b16 %v381, %v380
  %v434 = vpack.c.b16 %v383, %v382
  %v435 = vpack.c.b16 %v385, %v384
  %v436 = vpack.c.b16 %v387, %v386
  %v437 = vpack.c.b16 %v389, %v388
  %v438 = vpack.c.b16 %v391, %v390
  %v439 = vpack.c.b16 %v393, %v392
  %v440 = vpack.c.b16 %v395, %v394
  %v441 = vpack.c.b16 %v397, %v396
  %v442 = vpack.c.b16 %v399, %v398
  %v443 = vpack.c.b16 %v401, %v400
  %v444 = vpack.c.b16 %v403, %v402
  %v445 = vpack.c.b16 %v405, %v404
  %486 = vmatprep.subr.bf16.mxu0 0
  %487 = vmatpush1.bf16.msra.mxu0 %v406
  %488 = vmatprep.subr.bf16.mxu0 0
  %489 = vmatpush1.bf16.msra.mxu0 %v407
  %490 = vmatprep.subr.bf16.mxu0 0
  %491 = vmatpush1.bf16.msra.mxu0 %v408
  %492 = vmatprep.subr.bf16.mxu0 0
  %493 = vmatpush1.bf16.msra.mxu0 %v409
  %494 = vmatprep.subr.bf16.mxu0 0
  %495 = vmatpush1.bf16.msra.mxu0 %v410
  %496 = vmatprep.subr.bf16.mxu0 0
  %497 = vmatpush1.bf16.msra.mxu0 %v411
  %498 = vmatprep.subr.bf16.mxu0 0
  %499 = vmatpush1.bf16.msra.mxu0 %v412
  %500 = vmatprep.subr.bf16.mxu0 0
  %501 = vmatpush1.bf16.msra.mxu0 %v413
  %502 = vmatprep.subr.bf16.mxu0 0
  %503 = vmatpush1.bf16.msra.mxu0 %v414
  %504 = vmatprep.subr.bf16.mxu0 0
  %505 = vmatpush1.bf16.msra.mxu0 %v415
  %506 = vmatprep.subr.bf16.mxu0 0
  %507 = vmatpush1.bf16.msra.mxu0 %v416
  %508 = vmatprep.subr.bf16.mxu0 0
  %509 = vmatpush1.bf16.msra.mxu0 %v417
  %510 = vmatprep.subr.bf16.mxu0 0
  %511 = vmatpush1.bf16.msra.mxu0 %v418
  %512 = vmatprep.subr.bf16.mxu0 0
  %513 = vmatpush1.bf16.msra.mxu0 %v419
  %514 = vmatprep.subr.bf16.mxu0 0
  %515 = vmatpush1.bf16.msra.mxu0 %v420
  %516 = vmatprep.subr.bf16.mxu0 0
  %517 = vmatpush1.bf16.msra.mxu0 %v421
  %518 = vmatprep.mubr.bf16.mxu0 %v207
  %519 = vmatmul.mubr.bf16.gmra.mrb[0].mxu0 %v206
  %v520 = vpop.f32.mrb[0].mxu0
  %v521 = vadd.f32 0.0, %v520
  %v522 = vpop.f32.mrb[0].mxu0
  %v523 = vpop.f32.mrb[0].mxu0
  %v524 = vadd.f32 0.0, %v523
  %v525 = vpop.f32.mrb[0].mxu0
  %526 = vmatprep.mubr.bf16.mxu0 %v212
  %527 = vmatmul.mubr.bf16.gmra.mrb[0].mxu0 %v211
  %v528 = vpop.f32.mrb[0].mxu0
  %v529 = vadd.f32 0.0, %v528
  %v530 = vpop.f32.mrb[0].mxu0
  %v531 = vpop.f32.mrb[0].mxu0
  %v532 = vadd.f32 0.0, %v531
  %v533 = vpop.f32.mrb[0].mxu0
  %534 = vmatprep.mubr.bf16.mxu0 %v217
  %535 = vmatmul.mubr.bf16.gmra.mrb[0].mxu0 %v216
  %v536 = vpop.f32.mrb[0].mxu0
  %v537 = vadd.f32 0.0, %v536
  %v538 = vpop.f32.mrb[0].mxu0
  %v539 = vpop.f32.mrb[0].mxu0
  %v540 = vadd.f32 0.0, %v539
  %v541 = vpop.f32.mrb[0].mxu0
  %542 = vmatprep.mubr.bf16.mxu0 %v222
  %543 = vmatmul.mubr.bf16.gmra.mrb[0].mxu0 %v221
  %v544 = vpop.f32.mrb[0].mxu0
  %v545 = vadd.f32 0.0, %v544
  %v546 = vpop.f32.mrb[0].mxu0
  %v547 = vpop.f32.mrb[0].mxu0
  %v548 = vadd.f32 0.0, %v547
  %v549 = vpop.f32.mrb[0].mxu0
  %550 = vdwg.mxu0
  %551 = vmatprep.subr.bf16.mxu0 0
  %552 = vmatpush1.bf16.msra.mxu0 %v422
  %553 = vmatprep.subr.bf16.mxu0 0
  %554 = vmatpush1.bf16.msra.mxu0 %v423
  %555 = vmatprep.subr.bf16.mxu0 0
  %556 = vmatpush1.bf16.msra.mxu0 %v424
  %557 = vmatprep.subr.bf16.mxu0 0
  %558 = vmatpush1.bf16.msra.mxu0 %v425
  %559 = vmatprep.subr.bf16.mxu0 0
  %560 = vmatpush1.bf16.msra.mxu0 %v426
  %561 = vmatprep.subr.bf16.mxu0 0
  %562 = vmatpush1.bf16.msra.mxu0 %v427
  %563 = vmatprep.subr.bf16.mxu0 0
  %564 = vmatpush1.bf16.msra.mxu0 %v428
  %565 = vmatprep.subr.bf16.mxu0 0
  %566 = vmatpush1.bf16.msra.mxu0 %v429
  %567 = vmatprep.subr.bf16.mxu0 0
  %568 = vmatpush1.bf16.msra.mxu0 %v430
  %569 = vmatprep.subr.bf16.mxu0 0
  %570 = vmatpush1.bf16.msra.mxu0 %v431
  %571 = vmatprep.subr.bf16.mxu0 0
  %572 = vmatpush1.bf16.msra.mxu0 %v432
  %573 = vmatprep.subr.bf16.mxu0 0
  %574 = vmatpush1.bf16.msra.mxu0 %v433
  %575 = vmatprep.subr.bf16.mxu0 0
  %576 = vmatpush1.bf16.msra.mxu0 %v434
  %577 = vmatprep.subr.bf16.mxu0 0
  %578 = vmatpush1.bf16.msra.mxu0 %v435
  %579 = vmatprep.subr.bf16.mxu0 0
  %580 = vmatpush1.bf16.msra.mxu0 %v436
  %581 = vmatprep.subr.bf16.mxu0 0
  %582 = vmatpush1.bf16.msra.mxu0 %v437
  %583 = vmatprep.mubr.bf16.mxu0 %v209
  %584 = vmatmul.mubr.bf16.gmra.mrb[0].mxu0 %v208
  %v585 = vpop.f32.mrb[0].mxu0
  %v586 = vadd.f32 %v521, %v585
  %v587 = vpop.f32.mrb[0].mxu0
  %v588 = vpop.f32.mrb[0].mxu0
  %v589 = vadd.f32 %v524, %v588
  %v590 = vpop.f32.mrb[0].mxu0
  %591 = vmatprep.mubr.bf16.mxu0 %v214
  %592 = vmatmul.mubr.bf16.gmra.mrb[0].mxu0 %v213
  %v593 = vpop.f32.mrb[0].mxu0
  %v594 = vadd.f32 %v529, %v593
  %v595 = vpop.f32.mrb[0].mxu0
  %v596 = vpop.f32.mrb[0].mxu0
  %v597 = vadd.f32 %v532, %v596
  %v598 = vpop.f32.mrb[0].mxu0
  %599 = vmatprep.mubr.bf16.mxu0 %v219
  %600 = vmatmul.mubr.bf16.gmra.mrb[0].mxu0 %v218
  %v601 = vpop.f32.mrb[0].mxu0
  %v602 = vadd.f32 %v537, %v601
  %v603 = vpop.f32.mrb[0].mxu0
  %v604 = vpop.f32.mrb[0].mxu0
  %v605 = vadd.f32 %v540, %v604
  %v606 = vpop.f32.mrb[0].mxu0
  %607 = vmatprep.mubr.bf16.mxu0 %v224
  %608 = vmatmul.mubr.bf16.gmra.mrb[0].mxu0 %v223
  %v609 = vpop.f32.mrb[0].mxu0
  %v610 = vadd.f32 %v545, %v609
  %v611 = vpop.f32.mrb[0].mxu0
  %v612 = vpop.f32.mrb[0].mxu0
  %v613 = vadd.f32 %v548, %v612
  %v614 = vpop.f32.mrb[0].mxu0
  %615 = vdwg.mxu0
  %616 = vmatprep.subr.bf16.mxu0 0
  %617 = vmatpush1.bf16.msra.mxu0 %v438
  %618 = vmatprep.subr.bf16.mxu0 0
  %619 = vmatpush1.bf16.msra.mxu0 %v439
  %620 = vmatprep.subr.bf16.mxu0 0
  %621 = vmatpush1.bf16.msra.mxu0 %v440
  %622 = vmatprep.subr.bf16.mxu0 0
  %623 = vmatpush1.bf16.msra.mxu0 %v441
  %624 = vmatprep.subr.bf16.mxu0 0
  %625 = vmatpush1.bf16.msra.mxu0 %v442
  %626 = vmatprep.subr.bf16.mxu0 0
  %627 = vmatpush1.bf16.msra.mxu0 %v443
  %628 = vmatprep.subr.bf16.mxu0 0
  %629 = vmatpush1.bf16.msra.mxu0 %v444
  %630 = vmatprep.subr.bf16.mxu0 0
  %631 = vmatpush1.bf16.msra.mxu0 %v445
  %632 = vmatprep.subr.bf16.mxu0 0
  %633 = vmatpush1.bf16.msra.mxu0 0
  %634 = vmatprep.subr.bf16.mxu0 0
  %635 = vmatpush1.bf16.msra.mxu0 0
  %636 = vmatprep.subr.bf16.mxu0 0
  %637 = vmatpush1.bf16.msra.mxu0 0
  %638 = vmatprep.subr.bf16.mxu0 0
  %639 = vmatpush1.bf16.msra.mxu0 0
  %640 = vmatprep.subr.bf16.mxu0 0
  %641 = vmatpush1.bf16.msra.mxu0 0
  %642 = vmatprep.subr.bf16.mxu0 0
  %643 = vmatpush1.bf16.msra.mxu0 0
  %644 = vmatprep.subr.bf16.mxu0 0
  %645 = vmatpush1.bf16.msra.mxu0 0
  %646 = vmatprep.subr.bf16.mxu0 0
  %647 = vmatpush1.bf16.msra.mxu0 0
  %648 = vmatprep.mubr.bf16.mxu0 0
  %649 = vmatmul.mubr.bf16.gmra.mrb[0].mxu0 %v210
  %v650 = vpop.f32.mrb[0].mxu0
  %v651 = vadd.f32 %v586, %v650
  %v652 = vpop.f32.mrb[0].mxu0
  %v653 = vpop.f32.mrb[0].mxu0
  %v654 = vadd.f32 %v589, %v653
  %v655 = vpop.f32.mrb[0].mxu0
  %656 = vmatprep.mubr.bf16.mxu0 0
  %657 = vmatmul.mubr.bf16.gmra.mrb[0].mxu0 %v215
  %v658 = vpop.f32.mrb[0].mxu0
  %v659 = vadd.f32 %v594, %v658
  %v660 = vpop.f32.mrb[0].mxu0
  %v661 = vpop.f32.mrb[0].mxu0
  %v662 = vadd.f32 %v597, %v661
  %v663 = vpop.f32.mrb[0].mxu0
  %664 = vmatprep.mubr.bf16.mxu0 0
  %665 = vmatmul.mubr.bf16.gmra.mrb[0].mxu0 %v220
  %v666 = vpop.f32.mrb[0].mxu0
  %v667 = vadd.f32 %v602, %v666
  %v668 = vpop.f32.mrb[0].mxu0
  %v669 = vpop.f32.mrb[0].mxu0
  %v670 = vadd.f32 %v605, %v669
  %v671 = vpop.f32.mrb[0].mxu0
  %672 = vmatprep.mubr.bf16.mxu0 0
  %673 = vmatmul.mubr.bf16.gmra.mrb[0].mxu0 %v225
  %v674 = vpop.f32.mrb[0].mxu0
  %v675 = vadd.f32 %v610, %v674
  %v676 = vpop.f32.mrb[0].mxu0
  %v677 = vpop.f32.mrb[0].mxu0
  %v678 = vadd.f32 %v613, %v677
  %v679 = vpop.f32.mrb[0].mxu0
  %680 = vdwg.mxu0
  %v681 = vadd.f32 %v30, %v651
  %v682 = vadd.f32 %v31, %v654
  %v683 = vadd.f32 %v32, %v659
  %v684 = vadd.f32 %v33, %v662
  %v685 = vadd.f32 %v34, %v667
  %v686 = vadd.f32 %v35, %v670
  %v687 = vadd.f32 %v36, %v675
  %v688 = vadd.f32 %v37, %v678
  %689 = vst [vmem:[#allocation2] sm:$0xff] %v681
  %690 = vst [vmem:[#allocation2 + $0x8] sm:$0xff] %v682
  %691 = vst [vmem:[#allocation2 + $0x10] sm:$0xff] %v683
  %692 = vst [vmem:[#allocation2 + $0x18] sm:$0xff] %v684
  %693 = vst [vmem:[#allocation2 + $0x20] sm:$0xff] %v685
  %694 = vst [vmem:[#allocation2 + $0x28] sm:$0xff] %v686
  %695 = vst [vmem:[#allocation2 + $0x30] sm:$0xff] %v687
  %696 = vst [vmem:[#allocation2 + $0x38] sm:$0xff] %v688
  // Predicated region
  $region22: #{partial_resnet_pfyl_forward.9} parent=0 // pred_check
    %p697 = pneg %p18
  $region23: #{partial_resnet_pfyl_forward.9} parent=0 // pred_check_branch
    %699 = sbr.rel (%p697) target = $region25
  $region24: #{partial_resnet_pfyl_forward.9} parent=0 // pred_region
    %v700 = vld [vmem:[#allocation2] sm:$0xff]
    %v701 = vld [vmem:[#allocation2 + $0x8] sm:$0xff]
    %v702 = vld [vmem:[#allocation2 + $0x10] sm:$0xff]
    %v703 = vld [vmem:[#allocation2 + $0x18] sm:$0xff]
    %v704 = vld [vmem:[#allocation2 + $0x20] sm:$0xff]
    %v705 = vld [vmem:[#allocation2 + $0x28] sm:$0xff]
    %v706 = vld [vmem:[#allocation2 + $0x30] sm:$0xff]
    %v707 = vld [vmem:[#allocation2 + $0x38] sm:$0xff]
    %v708 = vld [vmem:[%s2] sm:$0x1]
    %v710 = vlaneseq
    %v711 = vshrl.u32 %v710, 7
    %v712 = vsub.s32 0, %v711
    %v713 = vrot.slane %v708, %v712
    %v715 = vadd.f32 %v700, %v713
    %v716 = vadd.f32 %v701, %v713
    %v717 = vadd.f32 %v702, %v713
    %v718 = vadd.f32 %v703, %v713
    %v719 = vadd.f32 %v704, %v713
    %v720 = vadd.f32 %v705, %v713
    %v721 = vadd.f32 %v706, %v713
    %v722 = vadd.f32 %v707, %v713
    %v723 = vld [vmem:[%s3] sm:$0xff]
    %v724 = vld [vmem:[%s3 + $0x8] sm:$0xff]
    %v725 = vld [vmem:[%s3 + $0x10] sm:$0xff]
    %v726 = vld [vmem:[%s3 + $0x18] sm:$0xff]
    %v727 = vld [vmem:[%s3 + $0x20] sm:$0xff]
    %v728 = vld [vmem:[%s3 + $0x28] sm:$0xff]
    %v729 = vld [vmem:[%s3 + $0x30] sm:$0xff]
    %v730 = vld [vmem:[%s3 + $0x38] sm:$0xff]
    %v731 = vadd.f32 %v715, %v723
    %v732 = vadd.f32 %v716, %v724
    %v733 = vadd.f32 %v717, %v725
    %v734 = vadd.f32 %v718, %v726
    %v735 = vadd.f32 %v719, %v727
    %v736 = vadd.f32 %v720, %v728
    %v737 = vadd.f32 %v721, %v729
    %v738 = vadd.f32 %v722, %v730
    %v739 = vmax.f32 %v731, 0.0
    %v740 = vmax.f32 %v732, 0.0
    %v741 = vmax.f32 %v733, 0.0
    %v742 = vmax.f32 %v734, 0.0
    %v743 = vmax.f32 %v735, 0.0
    %v744 = vmax.f32 %v736, 0.0
    %v745 = vmax.f32 %v737, 0.0
    %v746 = vmax.f32 %v738, 0.0
    %747 = vst [vmem:[%s4] sm:$0xff] %v739
    %748 = vst [vmem:[%s4 + $0x8] sm:$0xff] %v740
    %749 = vst [vmem:[%s4 + $0x10] sm:$0xff] %v741
    %750 = vst [vmem:[%s4 + $0x18] sm:$0xff] %v742
    %751 = vst [vmem:[%s4 + $0x20] sm:$0xff] %v743
    %752 = vst [vmem:[%s4 + $0x28] sm:$0xff] %v744
    %753 = vst [vmem:[%s4 + $0x30] sm:$0xff] %v745
    %754 = vst [vmem:[%s4 + $0x38] sm:$0xff] %v746
  $region25: #{partial_resnet_pfyl_forward.9} parent=0 // pred_fallthru
    _
  // Predicated region
  $region26: #{partial_resnet_pfyl_forward.9} parent=0 // pred_check
    _
  $region27: #{partial_resnet_pfyl_forward.9} parent=0 // pred_check_branch
    %756 = sbr.rel (0) target = $region29
  $region28: #{partial_resnet_pfyl_forward.9} parent=0 // pred_region
    _
  $region29: #{partial_resnet_pfyl_forward.9} parent=0 // pred_fallthru
    _
  // Predicated region
  $region30: #{partial_resnet_pfyl_forward.9} parent=0 // pred_check
    _
  $region31: #{partial_resnet_pfyl_forward.9} parent=0 // pred_check_branch
    %758 = sbr.rel (0) target = $region33
  $region32: #{partial_resnet_pfyl_forward.9} parent=0 // pred_region
    _
  $region33: #{partial_resnet_pfyl_forward.9} parent=0 // pred_fallthru
    _

// kernel: partial_resnet_pfyl_forward.13
$region0: #{partial_resnet_pfyl_forward.13}
  #allocation0 [shape = 'u32[]', space=smem, size = 0x4, offset = 0x4, fixed_abs, tag = 'smem constant byte address 0x4 - core index']
  #allocation1 [shape = 'u32[144,128]{1,0:T(1,128)}', space=vmem, size = 0x12000, scoped, tag = 'internal scratch']
  %s0 = inlined_call_operand.vmem [shape: f32[4,16], index: 0, kind: input, shape index: {}]
  %s1 = inlined_call_operand.vmem [shape: f32[4,16], index: 1, kind: input, shape index: {}]
  %s2 = inlined_call_operand.vmem [shape: f32[3,4,16], index: 2, kind: input, shape index: {}]
  %s3 = inlined_call_operand.vmem [shape: f32[4,1], index: 3, kind: output, shape index: {}]
  %s4 = sld [smem:[#allocation0]]
  $region22: #{partial_resnet_pfyl_forward.13} parent=0
    _
  %s6 = ssub.s32 1, %s4
  %s7 = scalar_select 0, %s6, %s4
  // Predicated region
  $region2: #{partial_resnet_pfyl_forward.13} parent=0 // pred_check
    _
  $region3: #{partial_resnet_pfyl_forward.13} parent=0 // pred_check_branch
    %9 = sbr.rel (0) target = $region5
  $region4: #{partial_resnet_pfyl_forward.13} parent=0 // pred_region
    _
  $region5: #{partial_resnet_pfyl_forward.13} parent=0 // pred_fallthru
    _
  // Predicated region
  $region6: #{partial_resnet_pfyl_forward.13} parent=0 // pred_check
    _
  $region7: #{partial_resnet_pfyl_forward.13} parent=0 // pred_check_branch
    %11 = sbr.rel (0) target = $region9
  $region8: #{partial_resnet_pfyl_forward.13} parent=0 // pred_region
    _
  $region9: #{partial_resnet_pfyl_forward.13} parent=0 // pred_fallthru
    _
  // Predicated region
  $region10: #{partial_resnet_pfyl_forward.13} parent=0 // pred_check
    _
  $region11: #{partial_resnet_pfyl_forward.13} parent=0 // pred_check_branch
    %13 = sbr.rel (0) target = $region13
  $region12: #{partial_resnet_pfyl_forward.13} parent=0 // pred_region
    _
  $region13: #{partial_resnet_pfyl_forward.13} parent=0 // pred_fallthru
    _
  %v14 = vld [vmem:[%s0] sm:$0xf]
  %v15 = vld [vmem:[%s1] sm:$0xf]
  %v16 = vld [vmem:[%s2] sm:$0xf]
  %v17 = vadd.f32 %v14, %v16
  %vm18 = vcmp.lt.f32.partialorder %v17, 0.0
  %v19 = vsel %vm18, 1.0, 0.0
  %v20 = vadd.f32 %v19, 0.0
  %s21 = scalar_lea.vmem %s2, 4
  %v22 = vld [vmem:[%s21] sm:$0xf]
  %v23 = vadd.f32 %v14, %v22
  %vm24 = vcmp.lt.f32.partialorder %v23, 0.0
  %v25 = vsel %vm24, 1.0, 0.0
  %v26 = vadd.f32 %v20, %v25
  %s27 = scalar_lea.vmem %s2, 8
  %v28 = vld [vmem:[%s27] sm:$0xf]
  %v29 = vadd.f32 %v14, %v28
  %vm30 = vcmp.lt.f32.partialorder %v29, 0.0
  %v31 = vsel %vm30, 1.0, 0.0
  %v32 = vadd.f32 %v26, %v31
  %v33 = vmul.f32 %v32, 0.33333334
  %v34 = vsub.f32 %v15, %v33
  %v35 = vmul.f32 %v34, %v14
  %vm36 = vcmask 125952
  %v37 = vsel %vm36, %v35, 0.0
  %38 = vadd.xlane.f32.xlu0 %v37
  %v39 = vpop.xlane.xlu0 %38
  %vm40 = vcmask 3072
  %41 = vst.msk [vmem:[%s3] sm:$0xf] %vm40, %v39
  // Predicated region
  $region14: #{partial_resnet_pfyl_forward.13} parent=0 // pred_check
    _
  $region15: #{partial_resnet_pfyl_forward.13} parent=0 // pred_check_branch
    %43 = sbr.rel (0) target = $region17
  $region16: #{partial_resnet_pfyl_forward.13} parent=0 // pred_region
    _
  $region17: #{partial_resnet_pfyl_forward.13} parent=0 // pred_fallthru
    _
  // Predicated region
  $region18: #{partial_resnet_pfyl_forward.13} parent=0 // pred_check
    _
  $region19: #{partial_resnet_pfyl_forward.13} parent=0 // pred_check_branch
    %45 = sbr.rel (0) target = $region21
  $region20: #{partial_resnet_pfyl_forward.13} parent=0 // pred_region
    _
  $region21: #{partial_resnet_pfyl_forward.13} parent=0 // pred_fallthru
    _

</llo_original>
